<compile_context>
chip_gen: v7x
topology: tpu7x:2x2x1
jax: 0.10.0
libtpu: 0.0.40
codegen_flags: <defaults>
</compile_context>

<pallas_src>
import functools
import math

import jax
import jax.numpy as jnp
from jax import lax
from jax.experimental import pallas as pl
from jax.experimental.pallas import tpu as pltpu


def encoder_layers_kernel(x_ref, maskt_ref, hmask_ref, ones_ref,
                          wq_ref, wk_ref, wv_ref, wo_ref, bo_ref,
                          g1_ref, b1_ref, w1_ref, bf1_ref,
                          w2_ref, bf2_ref, g2_ref, b2_ref,
                          out_ref, x_sc, *, heads):
    """Runs one (batch element, layer) step; residual stream lives in x_sc."""
    layer = pl.program_id(1)
    num_layers = pl.num_programs(1)

    # Load the embedded input into the resident residual stream at layer 0.
    @pl.when(layer == 0)
    def _():
        x_sc[...] = x_ref[0]

    x = x_sc[...]                                    # (S, E) f32 residual stream
    xb = x.astype(jnp.bfloat16)

    # ---- fused multi-head self-attention (block-diagonal head weights) ----
    # Q projection: one full-width (S,E)@(E,E) matmul; 1/sqrt(E) folded into wq.
    q = jnp.dot(xb, wq_ref[0], preferred_element_type=jnp.float32)
    qb = q.astype(jnp.bfloat16)

    # Head-major replicated activations (H*S, E): lanes outside head h's D-block
    # are zeroed, so the block-diagonal K/V projections yield per-head K/V slabs.
    xt = (jnp.concatenate([x] * heads, axis=0) * hmask_ref[...]).astype(jnp.bfloat16)
    kbig = jnp.dot(xt, wk_ref[0], preferred_element_type=jnp.float32).astype(jnp.bfloat16)
    vbig = jnp.dot(xt, wv_ref[0], preferred_element_type=jnp.float32).astype(jnp.bfloat16)

    # All heads' attention scores in one matmul: energy[s, h*S + k] = q_h[s]·k_h[k].
    energy = lax.dot_general(qb, kbig, (((1,), (1,)), ((), ())),
                             preferred_element_type=jnp.float32)      # (S, H*S)
    # key-padding mask, pre-tiled across heads in the wrapper -> (1, H*S)
    energy = jnp.where(maskt_ref[0] == 0, jnp.float32(-1e20), energy)

    # softmax per head block: global row max is valid for stability; per-block
    # denominators are broadcast back with a block-diagonal ones matmul.
    m = jnp.max(energy, axis=-1, keepdims=True)
    p = jnp.exp(energy - m)
    denom = jnp.dot(p, ones_ref[...], preferred_element_type=jnp.float32)
    attn = p * pl.reciprocal(denom, approx=True)

    ctx = jnp.dot(attn.astype(jnp.bfloat16), vbig,
                  preferred_element_type=jnp.float32)                 # (S, E)
    attn_out = jnp.dot(ctx.astype(jnp.bfloat16), wo_ref[0],
                       preferred_element_type=jnp.float32) + bo_ref[0]

    def layer_norm(y, g, b):
        mu = jnp.mean(y, axis=-1, keepdims=True)
        var = jnp.mean((y - mu) ** 2, axis=-1, keepdims=True)
        return (y - mu) * lax.rsqrt(var + 1e-5) * g + b

    # residual + norm1  (dropout is identity at p = 0)
    x1 = layer_norm(attn_out + x, g1_ref[0], b1_ref[0])

    # ---- feed forward ----
    hid = jnp.maximum(jnp.dot(x1.astype(jnp.bfloat16), w1_ref[0],
                              preferred_element_type=jnp.float32) + bf1_ref[0], 0.0)
    ff = jnp.dot(hid.astype(jnp.bfloat16), w2_ref[0],
                 preferred_element_type=jnp.float32) + bf2_ref[0]

    # residual + norm2
    x2 = layer_norm(ff + x1, g2_ref[0], b2_ref[0])

    x_sc[...] = x2                                   # carry to next layer

    @pl.when(layer == num_layers - 1)
    def _():
        out_ref[0] = x2


def encoder_forward(X, mask, word_emb, pos_emb, layer_params, heads):
    """X: (N, S) int32 token ids, mask: (N, S) int32 pad mask. Returns (N, S, E) f32."""
    N, S = X.shape
    E = word_emb.shape[1]
    D = E // heads
    HS = heads * S
    L = len(layer_params)
    hidden = layer_params[0]["w1"].shape[0]

    # Embedding lookup (gather) + positional embedding; dropout(p=0) == identity.
    x = (word_emb[X] + pos_emb[jnp.arange(S)][None, :, :]).astype(jnp.float32)

    # Key-padding mask pre-tiled across heads along the key axis: (N, 1, H*S).
    mask_t = jnp.tile(mask.reshape(N, 1, S).astype(jnp.int32), (1, 1, heads))

    eyeH = jnp.eye(heads, dtype=jnp.float32)
    inv_scale = 1.0 / math.sqrt(E)          # tutorial scales by sqrt(embed_size)

    def block_diag(w):                      # (D,D) head weight -> (E,E) x@W.T layout
        return jnp.kron(eyeH, w.T.astype(jnp.float32))

    # Per-layer weights stacked with a leading layer dim; matmul operands in bf16.
    wq = jnp.stack([block_diag(p["wq"]) * inv_scale for p in layer_params]).astype(jnp.bfloat16)
    wk = jnp.stack([block_diag(p["wk"]) for p in layer_params]).astype(jnp.bfloat16)
    wv = jnp.stack([block_diag(p["wv"]) for p in layer_params]).astype(jnp.bfloat16)
    wo = jnp.stack([p["wo"].T for p in layer_params]).astype(jnp.bfloat16)
    bo = jnp.stack([p["bo"].reshape(1, E) for p in layer_params]).astype(jnp.float32)
    g1 = jnp.stack([p["g1"].reshape(1, E) for p in layer_params]).astype(jnp.float32)
    b1 = jnp.stack([p["b1"].reshape(1, E) for p in layer_params]).astype(jnp.float32)
    w1 = jnp.stack([p["w1"].T for p in layer_params]).astype(jnp.bfloat16)
    bf1 = jnp.stack([p["bf1"].reshape(1, hidden) for p in layer_params]).astype(jnp.float32)
    w2 = jnp.stack([p["w2"].T for p in layer_params]).astype(jnp.bfloat16)
    bf2 = jnp.stack([p["bf2"].reshape(1, E) for p in layer_params]).astype(jnp.float32)
    g2 = jnp.stack([p["g2"].reshape(1, E) for p in layer_params]).astype(jnp.float32)
    b2 = jnp.stack([p["b2"].reshape(1, E) for p in layer_params]).astype(jnp.float32)

    # Head-selection mask for the (H*S, E) head-major slab.
    hmask = (jnp.arange(HS)[:, None] // S == jnp.arange(E)[None, :] // D).astype(jnp.float32)
    # Block-diagonal ones: broadcasts per-head softmax denominators back to (S, H*S).
    ones_blk = (jnp.arange(HS)[:, None] // S == jnp.arange(HS)[None, :] // S).astype(jnp.float32)

    def row_spec(shape):          # per-batch-element blocks
        return pl.BlockSpec((1,) + shape[1:], lambda n, l: (n, 0, 0))

    def layer_spec(shape):        # per-layer weight blocks (prefetched across layers)
        return pl.BlockSpec((1,) + shape[1:], lambda n, l: (l, 0, 0))

    def const_spec(shape):        # small constants, single resident block
        return pl.BlockSpec(shape, lambda n, l: (0, 0))

    weights = (wq, wk, wv, wo, bo, g1, b1, w1, bf1, w2, bf2, g2, b2)

    in_specs = ([row_spec(x.shape), row_spec(mask_t.shape),
                 const_spec(hmask.shape), const_spec(ones_blk.shape)]
                + [layer_spec(w.shape) for w in weights])

    kernel = functools.partial(encoder_layers_kernel, heads=heads)

    return pl.pallas_call(
        kernel,
        out_shape=jax.ShapeDtypeStruct((N, S, E), jnp.float32),
        grid=(N, L),
        in_specs=in_specs,
        out_specs=pl.BlockSpec((1, S, E), lambda n, l: (n, 0, 0)),
        scratch_shapes=[pltpu.VMEM((S, E), jnp.float32)],
        compiler_params=pltpu.CompilerParams(
            dimension_semantics=("parallel", "arbitrary")),
    )(x, mask_t, hmask, ones_blk, *weights)


if __name__ == "__main__":
    # Small, forward-consistent shapes.
    vocab_size = 50
    embed_size = 32
    num_layers = 2
    heads = 4
    forward_expansion = 4
    max_len = 16
    N, seq_len = 2, 8
    hidden = forward_expansion * embed_size
    D = embed_size // heads

    key = jax.random.PRNGKey(0)
    ks = jax.random.split(key, 32)

    def rnd(k, shape):
        return (0.02 * jax.random.normal(k, shape)).astype(jnp.float32)

    word_emb = rnd(ks[0], (vocab_size, embed_size))
    pos_emb = rnd(ks[1], (max_len, embed_size))

    layer_params = []
    ki = 2
    for _ in range(num_layers):
        layer_params.append(dict(
            wq=rnd(ks[ki + 0], (D, D)),
            wk=rnd(ks[ki + 1], (D, D)),
            wv=rnd(ks[ki + 2], (D, D)),
            wo=rnd(ks[ki + 3], (embed_size, embed_size)),
            bo=jnp.zeros((embed_size,), jnp.float32),
            g1=jnp.ones((embed_size,), jnp.float32),
            b1=jnp.zeros((embed_size,), jnp.float32),
            w1=rnd(ks[ki + 4], (hidden, embed_size)),
            bf1=jnp.zeros((hidden,), jnp.float32),
            w2=rnd(ks[ki + 5], (embed_size, hidden)),
            bf2=jnp.zeros((embed_size,), jnp.float32),
            g2=jnp.ones((embed_size,), jnp.float32),
            b2=jnp.zeros((embed_size,), jnp.float32),
        ))
        ki += 6

    X = jax.random.randint(ks[20], (N, seq_len), 0, vocab_size, dtype=jnp.int32)
    mask = jnp.ones((N, seq_len), jnp.int32)
    mask = mask.at[1, 6:].set(0)   # pad out the last 2 tokens of batch element 1

    out = encoder_forward(X, mask, word_emb, pos_emb, layer_params, heads)
    jax.block_until_ready(out)
    assert out.shape == (N, seq_len, embed_size)
    print("KERNEL_OK")
</pallas_src>

<mosaic_0001>
module attributes {stable_mosaic.version = 11 : i64} {
  func.func @encoder_layers_kernel(%arg0: i32, %arg1: i32, %arg2: memref<1x8x32xf32, #tpu.memory_space<vmem>>, %arg3: memref<1x1x32xi32, #tpu.memory_space<vmem>>, %arg4: memref<32x32xf32, #tpu.memory_space<vmem>>, %arg5: memref<32x32xf32, #tpu.memory_space<vmem>>, %arg6: memref<1x32x32xbf16, #tpu.memory_space<vmem>>, %arg7: memref<1x32x32xbf16, #tpu.memory_space<vmem>>, %arg8: memref<1x32x32xbf16, #tpu.memory_space<vmem>>, %arg9: memref<1x32x32xbf16, #tpu.memory_space<vmem>>, %arg10: memref<1x1x32xf32, #tpu.memory_space<vmem>>, %arg11: memref<1x1x32xf32, #tpu.memory_space<vmem>>, %arg12: memref<1x1x32xf32, #tpu.memory_space<vmem>>, %arg13: memref<1x32x128xbf16, #tpu.memory_space<vmem>>, %arg14: memref<1x1x128xf32, #tpu.memory_space<vmem>>, %arg15: memref<1x128x32xbf16, #tpu.memory_space<vmem>>, %arg16: memref<1x1x32xf32, #tpu.memory_space<vmem>>, %arg17: memref<1x1x32xf32, #tpu.memory_space<vmem>>, %arg18: memref<1x1x32xf32, #tpu.memory_space<vmem>>, %arg19: memref<1x8x32xf32, #tpu.memory_space<vmem>>, %arg20: memref<8x32xf32, #tpu.memory_space<vmem>>) attributes {dimension_semantics = [#tpu.dimension_semantics<parallel>, #tpu.dimension_semantics<arbitrary>], iteration_bounds = array<i64: 2, 2>, scalar_prefetch = 0 : i64, scratch_operands = 1 : i64, tpu.core_type = #tpu.core_type<tc>, window_params = [{transform_indices = @transform_0, window_bounds = array<i64: 1, 8, 32>}, {transform_indices = @transform_1, window_bounds = array<i64: 1, 1, 32>}, {pipeline_mode = #tpu.pipeline_mode<synchronous>, transform_indices = @transform_2, window_bounds = array<i64: 32, 32>}, {pipeline_mode = #tpu.pipeline_mode<synchronous>, transform_indices = @transform_3, window_bounds = array<i64: 32, 32>}, {transform_indices = @transform_4, window_bounds = array<i64: 1, 32, 32>}, {transform_indices = @transform_5, window_bounds = array<i64: 1, 32, 32>}, {transform_indices = @transform_6, window_bounds = array<i64: 1, 32, 32>}, {transform_indices = @transform_7, window_bounds = array<i64: 1, 32, 32>}, {transform_indices = @transform_8, window_bounds = array<i64: 1, 1, 32>}, {transform_indices = @transform_9, window_bounds = array<i64: 1, 1, 32>}, {transform_indices = @transform_10, window_bounds = array<i64: 1, 1, 32>}, {transform_indices = @transform_11, window_bounds = array<i64: 1, 32, 128>}, {transform_indices = @transform_12, window_bounds = array<i64: 1, 1, 128>}, {transform_indices = @transform_13, window_bounds = array<i64: 1, 128, 32>}, {transform_indices = @transform_14, window_bounds = array<i64: 1, 1, 32>}, {transform_indices = @transform_15, window_bounds = array<i64: 1, 1, 32>}, {transform_indices = @transform_16, window_bounds = array<i64: 1, 1, 32>}, {transform_indices = @transform_17, window_bounds = array<i64: 1, 8, 32>}]} {
    %c0_i32 = arith.constant 0 : i32
    %0 = arith.cmpi eq, %arg1, %c0_i32 : i32
    %1 = arith.extui %0 : i1 to i32
    %c0_i32_0 = arith.constant 0 : i32
    %2 = arith.cmpi ne, %1, %c0_i32_0 : i32
    scf.if %2 {
      %c0_73 = arith.constant 0 : index
      %c0_74 = arith.constant 0 : index
      %c0_75 = arith.constant 0 : index
      %125 = vector.load %arg2[%c0_73, %c0_74, %c0_75] : memref<1x8x32xf32, #tpu.memory_space<vmem>>, vector<1x8x32xf32>
      %126 = vector.shape_cast %125 : vector<1x8x32xf32> to vector<8x32xf32>
      %c0_76 = arith.constant 0 : index
      %c0_77 = arith.constant 0 : index
      %127 = vector.load %arg20[%c0_76, %c0_77] : memref<8x32xf32, #tpu.memory_space<vmem>>, vector<8x32xf32>
      tpu.vector_store %arg20[%c0_76, %c0_77], %126 {strides = array<i32>} : memref<8x32xf32, #tpu.memory_space<vmem>>, vector<8x32xf32>,
    } else {
    }
    %c0 = arith.constant 0 : index
    %c0_1 = arith.constant 0 : index
    %3 = vector.load %arg20[%c0, %c0_1] : memref<8x32xf32, #tpu.memory_space<vmem>>, vector<8x32xf32>
    %4 = arith.truncf %3 : vector<8x32xf32> to vector<8x32xbf16>
    %c0_2 = arith.constant 0 : index
    %c0_3 = arith.constant 0 : index
    %c0_4 = arith.constant 0 : index
    %5 = vector.load %arg6[%c0_2, %c0_3, %c0_4] : memref<1x32x32xbf16, #tpu.memory_space<vmem>>, vector<1x32x32xbf16>
    %6 = vector.shape_cast %5 : vector<1x32x32xbf16> to vector<32x32xbf16>
    %cst = arith.constant dense<0.000000e+00> : vector<8x32xf32>
    %7 = tpu.matmul %4, %6, %cst {dimension_numbers = #tpu.dot_dimension_numbers<[1], [0], [0], [1], [0, 0, 1, 1], [], []>} : vector<8x32xbf16>, vector<32x32xbf16>, vector<8x32xf32> -> vector<8x32xf32>
    %8 = arith.truncf %7 : vector<8x32xf32> to vector<8x32xbf16>
    %9 = tpu.concatenate %3, %3, %3, %3 in 0 : vector<8x32xf32>, vector<8x32xf32>, vector<8x32xf32>, vector<8x32xf32> -> vector<32x32xf32>
    %c0_5 = arith.constant 0 : index
    %c0_6 = arith.constant 0 : index
    %10 = vector.load %arg4[%c0_5, %c0_6] : memref<32x32xf32, #tpu.memory_space<vmem>>, vector<32x32xf32>
    %11 = arith.mulf %9, %10 : vector<32x32xf32>
    %12 = arith.truncf %11 : vector<32x32xf32> to vector<32x32xbf16>
    %c0_7 = arith.constant 0 : index
    %c0_8 = arith.constant 0 : index
    %c0_9 = arith.constant 0 : index
    %13 = vector.load %arg7[%c0_7, %c0_8, %c0_9] : memref<1x32x32xbf16, #tpu.memory_space<vmem>>, vector<1x32x32xbf16>
    %14 = vector.shape_cast %13 : vector<1x32x32xbf16> to vector<32x32xbf16>
    %cst_10 = arith.constant dense<0.000000e+00> : vector<32x32xf32>
    %15 = tpu.matmul %12, %14, %cst_10 {dimension_numbers = #tpu.dot_dimension_numbers<[1], [0], [0], [1], [0, 0, 1, 1], [], []>} : vector<32x32xbf16>, vector<32x32xbf16>, vector<32x32xf32> -> vector<32x32xf32>
    %16 = arith.truncf %15 : vector<32x32xf32> to vector<32x32xbf16>
    %c0_11 = arith.constant 0 : index
    %c0_12 = arith.constant 0 : index
    %c0_13 = arith.constant 0 : index
    %17 = vector.load %arg8[%c0_11, %c0_12, %c0_13] : memref<1x32x32xbf16, #tpu.memory_space<vmem>>, vector<1x32x32xbf16>
    %18 = vector.shape_cast %17 : vector<1x32x32xbf16> to vector<32x32xbf16>
    %cst_14 = arith.constant dense<0.000000e+00> : vector<32x32xf32>
    %19 = tpu.matmul %12, %18, %cst_14 {dimension_numbers = #tpu.dot_dimension_numbers<[1], [0], [0], [1], [0, 0, 1, 1], [], []>} : vector<32x32xbf16>, vector<32x32xbf16>, vector<32x32xf32> -> vector<32x32xf32>
    %20 = arith.truncf %19 : vector<32x32xf32> to vector<32x32xbf16>
    %cst_15 = arith.constant dense<0.000000e+00> : vector<8x32xf32>
    %21 = tpu.matmul %8, %16, %cst_15 {dimension_numbers = #tpu.dot_dimension_numbers<[1], [1], [0], [0], [0, 0, 1, 0], [], []>} : vector<8x32xbf16>, vector<32x32xbf16>, vector<8x32xf32> -> vector<8x32xf32>
    %c0_16 = arith.constant 0 : index
    %c0_17 = arith.constant 0 : index
    %c0_18 = arith.constant 0 : index
    %22 = vector.load %arg3[%c0_16, %c0_17, %c0_18] : memref<1x1x32xi32, #tpu.memory_space<vmem>>, vector<1x1x32xi32>
    %23 = vector.shape_cast %22 : vector<1x1x32xi32> to vector<1x32xi32>
    %c0_i32_19 = arith.constant 0 : i32
    %24 = vector.broadcast %c0_i32_19 : i32 to vector<1x32xi32>
    %25 = arith.cmpi eq, %23, %24 : vector<1x32xi32>
    %cst_20 = arith.constant -1.000000e+20 : f32
    %26 = vector.shape_cast %25 : vector<1x32xi1> to vector<1x32xi1>
    %27 = vector.broadcast %26 : vector<1x32xi1> to vector<8x32xi1>
    %28 = vector.broadcast %cst_20 : f32 to vector<8x32xf32>
    %29 = arith.select %27, %28, %21 : vector<8x32xi1>, vector<8x32xf32>
    %cst_21 = arith.constant dense<0xFF800000> : vector<8xf32>
    %30 = vector.multi_reduction <maximumf>, %29, %cst_21 [1] : vector<8x32xf32> to vector<8xf32>
    %31 = vector.shape_cast %30 : vector<8xf32> to vector<8x1xf32>
    %32 = vector.broadcast %31 : vector<8x1xf32> to vector<8x32xf32>
    %33 = arith.subf %29, %32 : vector<8x32xf32>
    %34 = math.exp %33 : vector<8x32xf32>
    %c0_22 = arith.constant 0 : index
    %c0_23 = arith.constant 0 : index
    %35 = vector.load %arg5[%c0_22, %c0_23] : memref<32x32xf32, #tpu.memory_space<vmem>>, vector<32x32xf32>
    %cst_24 = arith.constant dense<0.000000e+00> : vector<8x32xf32>
    %36 = tpu.matmul %34, %35, %cst_24 {dimension_numbers = #tpu.dot_dimension_numbers<[1], [0], [0], [1], [0, 0, 1, 1], [], []>} : vector<8x32xf32>, vector<32x32xf32>, vector<8x32xf32> -> vector<8x32xf32>
    %37 = tpu.reciprocal %36 {approx = true} : vector<8x32xf32> -> vector<8x32xf32>
    %38 = arith.mulf %34, %37 : vector<8x32xf32>
    %39 = arith.truncf %38 : vector<8x32xf32> to vector<8x32xbf16>
    %cst_25 = arith.constant dense<0.000000e+00> : vector<8x32xf32>
    %40 = tpu.matmul %39, %20, %cst_25 {dimension_numbers = #tpu.dot_dimension_numbers<[1], [0], [0], [1], [0, 0, 1, 1], [], []>} : vector<8x32xbf16>, vector<32x32xbf16>, vector<8x32xf32> -> vector<8x32xf32>
    %41 = arith.truncf %40 : vector<8x32xf32> to vector<8x32xbf16>
    %c0_26 = arith.constant 0 : index
    %c0_27 = arith.constant 0 : index
    %c0_28 = arith.constant 0 : index
    %42 = vector.load %arg9[%c0_26, %c0_27, %c0_28] : memref<1x32x32xbf16, #tpu.memory_space<vmem>>, vector<1x32x32xbf16>
    %43 = vector.shape_cast %42 : vector<1x32x32xbf16> to vector<32x32xbf16>
    %cst_29 = arith.constant dense<0.000000e+00> : vector<8x32xf32>
    %44 = tpu.matmul %41, %43, %cst_29 {dimension_numbers = #tpu.dot_dimension_numbers<[1], [0], [0], [1], [0, 0, 1, 1], [], []>} : vector<8x32xbf16>, vector<32x32xbf16>, vector<8x32xf32> -> vector<8x32xf32>
    %c0_30 = arith.constant 0 : index
    %c0_31 = arith.constant 0 : index
    %c0_32 = arith.constant 0 : index
    %45 = vector.load %arg10[%c0_30, %c0_31, %c0_32] : memref<1x1x32xf32, #tpu.memory_space<vmem>>, vector<1x1x32xf32>
    %46 = vector.shape_cast %45 : vector<1x1x32xf32> to vector<1x32xf32>
    %47 = vector.broadcast %46 : vector<1x32xf32> to vector<8x32xf32>
    %48 = arith.addf %44, %47 : vector<8x32xf32>
    %49 = arith.addf %48, %3 : vector<8x32xf32>
    %c0_33 = arith.constant 0 : index
    %c0_34 = arith.constant 0 : index
    %c0_35 = arith.constant 0 : index
    %50 = vector.load %arg11[%c0_33, %c0_34, %c0_35] : memref<1x1x32xf32, #tpu.memory_space<vmem>>, vector<1x1x32xf32>
    %51 = vector.shape_cast %50 : vector<1x1x32xf32> to vector<1x32xf32>
    %c0_36 = arith.constant 0 : index
    %c0_37 = arith.constant 0 : index
    %c0_38 = arith.constant 0 : index
    %52 = vector.load %arg12[%c0_36, %c0_37, %c0_38] : memref<1x1x32xf32, #tpu.memory_space<vmem>>, vector<1x1x32xf32>
    %53 = vector.shape_cast %52 : vector<1x1x32xf32> to vector<1x32xf32>
    %cst_39 = arith.constant dense<0.000000e+00> : vector<8xf32>
    %54 = vector.multi_reduction <add>, %49, %cst_39 [1] : vector<8x32xf32> to vector<8xf32>
    %55 = vector.shape_cast %54 : vector<8xf32> to vector<8x1xf32>
    %cst_40 = arith.constant 3.200000e+01 : f32
    %56 = vector.broadcast %cst_40 : f32 to vector<8x1xf32>
    %57 = arith.divf %55, %56 : vector<8x1xf32>
    %58 = vector.broadcast %57 : vector<8x1xf32> to vector<8x32xf32>
    %59 = arith.subf %49, %58 : vector<8x32xf32>
    %60 = arith.mulf %59, %59 : vector<8x32xf32>
    %cst_41 = arith.constant dense<0.000000e+00> : vector<8xf32>
    %61 = vector.multi_reduction <add>, %60, %cst_41 [1] : vector<8x32xf32> to vector<8xf32>
    %62 = vector.shape_cast %61 : vector<8xf32> to vector<8x1xf32>
    %cst_42 = arith.constant 3.200000e+01 : f32
    %63 = vector.broadcast %cst_42 : f32 to vector<8x1xf32>
    %64 = arith.divf %62, %63 : vector<8x1xf32>
    %65 = vector.broadcast %57 : vector<8x1xf32> to vector<8x32xf32>
    %66 = arith.subf %49, %65 : vector<8x32xf32>
    %cst_43 = arith.constant 9.99999974E-6 : f32
    %67 = vector.broadcast %cst_43 : f32 to vector<8x1xf32>
    %68 = arith.addf %64, %67 : vector<8x1xf32>
    %69 = math.rsqrt %68 : vector<8x1xf32>
    %70 = vector.broadcast %69 : vector<8x1xf32> to vector<8x32xf32>
    %71 = arith.mulf %66, %70 : vector<8x32xf32>
    %72 = vector.broadcast %51 : vector<1x32xf32> to vector<8x32xf32>
    %73 = arith.mulf %71, %72 : vector<8x32xf32>
    %74 = vector.broadcast %53 : vector<1x32xf32> to vector<8x32xf32>
    %75 = arith.addf %73, %74 : vector<8x32xf32>
    %76 = arith.truncf %75 : vector<8x32xf32> to vector<8x32xbf16>
    %c0_44 = arith.constant 0 : index
    %c0_45 = arith.constant 0 : index
    %c0_46 = arith.constant 0 : index
    %77 = vector.load %arg13[%c0_44, %c0_45, %c0_46] : memref<1x32x128xbf16, #tpu.memory_space<vmem>>, vector<1x32x128xbf16>
    %78 = vector.shape_cast %77 : vector<1x32x128xbf16> to vector<32x128xbf16>
    %cst_47 = arith.constant dense<0.000000e+00> : vector<8x128xf32>
    %79 = tpu.matmul %76, %78, %cst_47 {dimension_numbers = #tpu.dot_dimension_numbers<[1], [0], [0], [1], [0, 0, 1, 1], [], []>} : vector<8x32xbf16>, vector<32x128xbf16>, vector<8x128xf32> -> vector<8x128xf32>
    %c0_48 = arith.constant 0 : index
    %c0_49 = arith.constant 0 : index
    %c0_50 = arith.constant 0 : index
    %80 = vector.load %arg14[%c0_48, %c0_49, %c0_50] : memref<1x1x128xf32, #tpu.memory_space<vmem>>, vector<1x1x128xf32>
    %81 = vector.shape_cast %80 : vector<1x1x128xf32> to vector<1x128xf32>
    %82 = vector.broadcast %81 : vector<1x128xf32> to vector<8x128xf32>
    %83 = arith.addf %79, %82 : vector<8x128xf32>
    %cst_51 = arith.constant 0.000000e+00 : f32
    %84 = vector.broadcast %cst_51 : f32 to vector<8x128xf32>
    %85 = arith.maximumf %83, %84 : vector<8x128xf32>
    %86 = arith.truncf %85 : vector<8x128xf32> to vector<8x128xbf16>
    %c0_52 = arith.constant 0 : index
    %c0_53 = arith.constant 0 : index
    %c0_54 = arith.constant 0 : index
    %87 = vector.load %arg15[%c0_52, %c0_53, %c0_54] : memref<1x128x32xbf16, #tpu.memory_space<vmem>>, vector<1x128x32xbf16>
    %88 = vector.shape_cast %87 : vector<1x128x32xbf16> to vector<128x32xbf16>
    %cst_55 = arith.constant dense<0.000000e+00> : vector<8x32xf32>
    %89 = tpu.matmul %86, %88, %cst_55 {dimension_numbers = #tpu.dot_dimension_numbers<[1], [0], [0], [1], [0, 0, 1, 1], [], []>} : vector<8x128xbf16>, vector<128x32xbf16>, vector<8x32xf32> -> vector<8x32xf32>
    %c0_56 = arith.constant 0 : index
    %c0_57 = arith.constant 0 : index
    %c0_58 = arith.constant 0 : index
    %90 = vector.load %arg16[%c0_56, %c0_57, %c0_58] : memref<1x1x32xf32, #tpu.memory_space<vmem>>, vector<1x1x32xf32>
    %91 = vector.shape_cast %90 : vector<1x1x32xf32> to vector<1x32xf32>
    %92 = vector.broadcast %91 : vector<1x32xf32> to vector<8x32xf32>
    %93 = arith.addf %89, %92 : vector<8x32xf32>
    %94 = arith.addf %93, %75 : vector<8x32xf32>
    %c0_59 = arith.constant 0 : index
    %c0_60 = arith.constant 0 : index
    %c0_61 = arith.constant 0 : index
    %95 = vector.load %arg17[%c0_59, %c0_60, %c0_61] : memref<1x1x32xf32, #tpu.memory_space<vmem>>, vector<1x1x32xf32>
    %96 = vector.shape_cast %95 : vector<1x1x32xf32> to vector<1x32xf32>
    %c0_62 = arith.constant 0 : index
    %c0_63 = arith.constant 0 : index
    %c0_64 = arith.constant 0 : index
    %97 = vector.load %arg18[%c0_62, %c0_63, %c0_64] : memref<1x1x32xf32, #tpu.memory_space<vmem>>, vector<1x1x32xf32>
    %98 = vector.shape_cast %97 : vector<1x1x32xf32> to vector<1x32xf32>
    %cst_65 = arith.constant dense<0.000000e+00> : vector<8xf32>
    %99 = vector.multi_reduction <add>, %94, %cst_65 [1] : vector<8x32xf32> to vector<8xf32>
    %100 = vector.shape_cast %99 : vector<8xf32> to vector<8x1xf32>
    %cst_66 = arith.constant 3.200000e+01 : f32
    %101 = vector.broadcast %cst_66 : f32 to vector<8x1xf32>
    %102 = arith.divf %100, %101 : vector<8x1xf32>
    %103 = vector.broadcast %102 : vector<8x1xf32> to vector<8x32xf32>
    %104 = arith.subf %94, %103 : vector<8x32xf32>
    %105 = arith.mulf %104, %104 : vector<8x32xf32>
    %cst_67 = arith.constant dense<0.000000e+00> : vector<8xf32>
    %106 = vector.multi_reduction <add>, %105, %cst_67 [1] : vector<8x32xf32> to vector<8xf32>
    %107 = vector.shape_cast %106 : vector<8xf32> to vector<8x1xf32>
    %cst_68 = arith.constant 3.200000e+01 : f32
    %108 = vector.broadcast %cst_68 : f32 to vector<8x1xf32>
    %109 = arith.divf %107, %108 : vector<8x1xf32>
    %110 = vector.broadcast %102 : vector<8x1xf32> to vector<8x32xf32>
    %111 = arith.subf %94, %110 : vector<8x32xf32>
    %cst_69 = arith.constant 9.99999974E-6 : f32
    %112 = vector.broadcast %cst_69 : f32 to vector<8x1xf32>
    %113 = arith.addf %109, %112 : vector<8x1xf32>
    %114 = math.rsqrt %113 : vector<8x1xf32>
    %115 = vector.broadcast %114 : vector<8x1xf32> to vector<8x32xf32>
    %116 = arith.mulf %111, %115 : vector<8x32xf32>
    %117 = vector.broadcast %96 : vector<1x32xf32> to vector<8x32xf32>
    %118 = arith.mulf %116, %117 : vector<8x32xf32>
    %119 = vector.broadcast %98 : vector<1x32xf32> to vector<8x32xf32>
    %120 = arith.addf %118, %119 : vector<8x32xf32>
    %c0_70 = arith.constant 0 : index
    %c0_71 = arith.constant 0 : index
    %121 = vector.load %arg20[%c0_70, %c0_71] : memref<8x32xf32, #tpu.memory_space<vmem>>, vector<8x32xf32>
    tpu.vector_store %arg20[%c0_70, %c0_71], %120 {strides = array<i32>} : memref<8x32xf32, #tpu.memory_space<vmem>>, vector<8x32xf32>,
    %c1_i32 = arith.constant 1 : i32
    %122 = arith.cmpi eq, %arg1, %c1_i32 : i32
    %123 = arith.extui %122 : i1 to i32
    %c0_i32_72 = arith.constant 0 : i32
    %124 = arith.cmpi ne, %123, %c0_i32_72 : i32
    scf.if %124 {
      %c0_73 = arith.constant 0 : index
      %c0_74 = arith.constant 0 : index
      %c0_75 = arith.constant 0 : index
      %125 = vector.load %arg19[%c0_73, %c0_74, %c0_75] : memref<1x8x32xf32, #tpu.memory_space<vmem>>, vector<1x8x32xf32>
      %126 = vector.shape_cast %125 : vector<1x8x32xf32> to vector<8x32xf32>
      %127 = vector.shape_cast %120 : vector<8x32xf32> to vector<1x8x32xf32>
      tpu.vector_store %arg19[%c0_73, %c0_74, %c0_75], %127 {strides = array<i32>} : memref<1x8x32xf32, #tpu.memory_space<vmem>>, vector<1x8x32xf32>,
    } else {
    }
    return
  }
  func.func @transform_0(%arg0: i32, %arg1: i32) -> (i32, i32, i32) {
    %c0_i32 = arith.constant 0 : i32
    %c0_i32_0 = arith.constant 0 : i32
    %c0_i32_1 = arith.constant 0 : i32
    return %arg0, %c0_i32, %c0_i32_0 : i32, i32, i32
  }
  func.func @transform_1(%arg0: i32, %arg1: i32) -> (i32, i32, i32) {
    %c0_i32 = arith.constant 0 : i32
    %c0_i32_0 = arith.constant 0 : i32
    %c0_i32_1 = arith.constant 0 : i32
    return %arg0, %c0_i32, %c0_i32_0 : i32, i32, i32
  }
  func.func @transform_2(%arg0: i32, %arg1: i32) -> (i32, i32) {
    %c0_i32 = arith.constant 0 : i32
    %c0_i32_0 = arith.constant 0 : i32
    %c0_i32_1 = arith.constant 0 : i32
    return %c0_i32, %c0_i32_0 : i32, i32
  }
  func.func @transform_3(%arg0: i32, %arg1: i32) -> (i32, i32) {
    %c0_i32 = arith.constant 0 : i32
    %c0_i32_0 = arith.constant 0 : i32
    %c0_i32_1 = arith.constant 0 : i32
    return %c0_i32, %c0_i32_0 : i32, i32
  }
  func.func @transform_4(%arg0: i32, %arg1: i32) -> (i32, i32, i32) {
    %c0_i32 = arith.constant 0 : i32
    %c0_i32_0 = arith.constant 0 : i32
    %c0_i32_1 = arith.constant 0 : i32
    return %arg1, %c0_i32, %c0_i32_0 : i32, i32, i32
  }
  func.func @transform_5(%arg0: i32, %arg1: i32) -> (i32, i32, i32) {
    %c0_i32 = arith.constant 0 : i32
    %c0_i32_0 = arith.constant 0 : i32
    %c0_i32_1 = arith.constant 0 : i32
    return %arg1, %c0_i32, %c0_i32_0 : i32, i32, i32
  }
  func.func @transform_6(%arg0: i32, %arg1: i32) -> (i32, i32, i32) {
    %c0_i32 = arith.constant 0 : i32
    %c0_i32_0 = arith.constant 0 : i32
    %c0_i32_1 = arith.constant 0 : i32
    return %arg1, %c0_i32, %c0_i32_0 : i32, i32, i32
  }
  func.func @transform_7(%arg0: i32, %arg1: i32) -> (i32, i32, i32) {
    %c0_i32 = arith.constant 0 : i32
    %c0_i32_0 = arith.constant 0 : i32
    %c0_i32_1 = arith.constant 0 : i32
    return %arg1, %c0_i32, %c0_i32_0 : i32, i32, i32
  }
  func.func @transform_8(%arg0: i32, %arg1: i32) -> (i32, i32, i32) {
    %c0_i32 = arith.constant 0 : i32
    %c0_i32_0 = arith.constant 0 : i32
    %c0_i32_1 = arith.constant 0 : i32
    return %arg1, %c0_i32, %c0_i32_0 : i32, i32, i32
  }
  func.func @transform_9(%arg0: i32, %arg1: i32) -> (i32, i32, i32) {
    %c0_i32 = arith.constant 0 : i32
    %c0_i32_0 = arith.constant 0 : i32
    %c0_i32_1 = arith.constant 0 : i32
    return %arg1, %c0_i32, %c0_i32_0 : i32, i32, i32
  }
  func.func @transform_10(%arg0: i32, %arg1: i32) -> (i32, i32, i32) {
    %c0_i32 = arith.constant 0 : i32
    %c0_i32_0 = arith.constant 0 : i32
    %c0_i32_1 = arith.constant 0 : i32
    return %arg1, %c0_i32, %c0_i32_0 : i32, i32, i32
  }
  func.func @transform_11(%arg0: i32, %arg1: i32) -> (i32, i32, i32) {
    %c0_i32 = arith.constant 0 : i32
    %c0_i32_0 = arith.constant 0 : i32
    %c0_i32_1 = arith.constant 0 : i32
    return %arg1, %c0_i32, %c0_i32_0 : i32, i32, i32
  }
  func.func @transform_12(%arg0: i32, %arg1: i32) -> (i32, i32, i32) {
    %c0_i32 = arith.constant 0 : i32
    %c0_i32_0 = arith.constant 0 : i32
    %c0_i32_1 = arith.constant 0 : i32
    return %arg1, %c0_i32, %c0_i32_0 : i32, i32, i32
  }
  func.func @transform_13(%arg0: i32, %arg1: i32) -> (i32, i32, i32) {
    %c0_i32 = arith.constant 0 : i32
    %c0_i32_0 = arith.constant 0 : i32
    %c0_i32_1 = arith.constant 0 : i32
    return %arg1, %c0_i32, %c0_i32_0 : i32, i32, i32
  }
  func.func @transform_14(%arg0: i32, %arg1: i32) -> (i32, i32, i32) {
    %c0_i32 = arith.constant 0 : i32
    %c0_i32_0 = arith.constant 0 : i32
    %c0_i32_1 = arith.constant 0 : i32
    return %arg1, %c0_i32, %c0_i32_0 : i32, i32, i32
  }
  func.func @transform_15(%arg0: i32, %arg1: i32) -> (i32, i32, i32) {
    %c0_i32 = arith.constant 0 : i32
    %c0_i32_0 = arith.constant 0 : i32
    %c0_i32_1 = arith.constant 0 : i32
    return %arg1, %c0_i32, %c0_i32_0 : i32, i32, i32
  }
  func.func @transform_16(%arg0: i32, %arg1: i32) -> (i32, i32, i32) {
    %c0_i32 = arith.constant 0 : i32
    %c0_i32_0 = arith.constant 0 : i32
    %c0_i32_1 = arith.constant 0 : i32
    return %arg1, %c0_i32, %c0_i32_0 : i32, i32, i32
  }
  func.func @transform_17(%arg0: i32, %arg1: i32) -> (i32, i32, i32) {
    %c0_i32 = arith.constant 0 : i32
    %c0_i32_0 = arith.constant 0 : i32
    %c0_i32_1 = arith.constant 0 : i32
    return %arg0, %c0_i32, %c0_i32_0 : i32, i32, i32
  }
}

</mosaic_0001>

<llo_original>
// kernel: tpu_custom_call.1
$region0: #{tpu_custom_call.1}
  #allocation0 [shape = 'u32[]', space=smem, size = 0x4, offset = 0x4, fixed_abs, tag = 'smem constant byte address 0x4 - core index']
  #allocation1 [shape = 'u32[144,128]{1,0:T(1,128)}', space=vmem, size = 0x12000, scoped, tag = 'internal scratch']
  #allocation2 [shape = 'f32[8,32]{1,0:T(8,128)}', space=vmem, size = 0x1000, scoped, tag = 'scratch operand']
  %s0 = inlined_call_operand.hbm [shape: f32[2,8,32], index: 0, kind: input, shape index: {}]
  %s1 = inlined_call_operand.vmem [shape: s32[2,1,32], index: 1, kind: input, shape index: {}]
  %s2 = inlined_call_operand.vmem [shape: f32[32,32], index: 2, kind: input, shape index: {}]
  %s3 = inlined_call_operand.vmem [shape: f32[32,32], index: 3, kind: input, shape index: {}]
  %s4 = inlined_call_operand.vmem [shape: bf16[2,32,32], index: 4, kind: input, shape index: {}]
  %s5 = inlined_call_operand.vmem [shape: bf16[2,32,32], index: 5, kind: input, shape index: {}]
  %s6 = inlined_call_operand.vmem [shape: bf16[2,32,32], index: 6, kind: input, shape index: {}]
  %s7 = inlined_call_operand.hbm [shape: bf16[2,32,32], index: 7, kind: input, shape index: {}]
  %s8 = inlined_call_operand.vmem [shape: f32[2,1,32], index: 8, kind: input, shape index: {}]
  %s9 = inlined_call_operand.vmem [shape: f32[2,1,32], index: 9, kind: input, shape index: {}]
  %s10 = inlined_call_operand.vmem [shape: f32[2,1,32], index: 10, kind: input, shape index: {}]
  %s11 = inlined_call_operand.hbm [shape: bf16[2,32,128], index: 11, kind: input, shape index: {}]
  %s12 = inlined_call_operand.vmem [shape: f32[2,1,128], index: 12, kind: input, shape index: {}]
  %s13 = inlined_call_operand.vmem [shape: bf16[2,128,32], index: 13, kind: input, shape index: {}]
  %s14 = inlined_call_operand.vmem [shape: f32[2,1,32], index: 14, kind: input, shape index: {}]
  %s15 = inlined_call_operand.vmem [shape: f32[2,1,32], index: 15, kind: input, shape index: {}]
  %s16 = inlined_call_operand.vmem [shape: f32[2,1,32], index: 16, kind: input, shape index: {}]
  %s17 = inlined_call_operand.hbm [shape: f32[2,8,32], index: 17, kind: output, shape index: {}]
  %s18 = sld [smem:[#allocation0]]
  $region121: #{tpu_custom_call.1} parent=0
    _
  %s20 = ssub.s32 1, %s18
  %s21 = scalar_select 0, %s20, %s18
  $region1: #{tpu_custom_call.1} parent=0
    #allocation3 [shape = 'u8[8192]{0}', space=vmem, size = 0x2000, scoped, tag = 'input window, operand 0']
    #allocation4 [shape = 's32[2]{0}', space=sflag, size = 0x8, scoped, tag = 'scoped memory for tpu_custom_call.1']
    #allocation5 [shape = 's32[2]{0}', space=sflag, size = 0x8, scoped, tag = 'scoped memory for tpu_custom_call.1']
    #allocation6 [shape = 'u8[16384]{0}', space=vmem, size = 0x4000, scoped, tag = 'input window, operand 7']
    #allocation7 [shape = 's32[2]{0}', space=sflag, size = 0x8, scoped, tag = 'scoped memory for tpu_custom_call.1']
    #allocation8 [shape = 'u8[16384]{0}', space=vmem, size = 0x4000, scoped, tag = 'input window, operand 11']
    #allocation9 [shape = 'u8[8192]{0}', space=vmem, size = 0x2000, scoped, tag = 'output window, operand 0']
    %22 = vsyncpa [#allocation4], 0
    %s23 = scalar_lea.sflag [#allocation4], 1
    %24 = vsyncpa %s23, 0
    %25 = vsyncpa [#allocation7], 0
    %s26 = scalar_lea.sflag [#allocation7], 1
    %27 = vsyncpa %s26, 0
    %28 = vsyncpa [#allocation5], 0
    %s29 = scalar_lea.sflag [#allocation5], 1
    %30 = vsyncpa %s29, 0
    loop: start=0, step=1, limit=6
    $region2: #{tpu_custom_call.1} parent=1 // loop_pre_header
      _
    $region3: #{tpu_custom_call.1} parent=1 // loop_header
      %s32 = sphi 0, %s36
      %p33 = scmp.ge.s32.totalorder %s32, 6
      %s39 = sphi 0, %s51
      %s40 = sphi 0, %s47
      %s41 = sphi 0, %s39
      %s42 = sphi 0, %s40
      %s43 = sphi 0, %s41
      %s44 = sphi 0, %s42
      %s54 = sphi 0, %s56
      %s57 = sphi 0, %s54
      %s58 = sphi 0, %s57
      %s74 = sphi 0, %s58
      %s80 = sphi 0, %s82
      %s83 = sphi 0, %s80
      %s84 = sphi 0, %s83
      %s100 = sphi 0, %s84
      %s104 = sphi 0, %s104
      %s106 = sphi 0, %s104
      %s107 = sphi 0, %s106
      %s121 = sphi 0, %s107
      %s125 = sphi 0, %s125
      %s127 = sphi 0, %s125
      %s128 = sphi 0, %s127
      %s142 = sphi 0, %s128
      %s148 = sphi 0, %s150
      %s151 = sphi 0, %s148
      %s152 = sphi 0, %s151
      %s168 = sphi 0, %s152
      %s174 = sphi 0, %s176
      %s177 = sphi 0, %s174
      %s178 = sphi 0, %s177
      %s194 = sphi 0, %s178
      %s200 = sphi 0, %s202
      %s203 = sphi 0, %s200
      %s204 = sphi 0, %s203
      %s220 = sphi 0, %s204
      %s226 = sphi 0, %s228
      %s229 = sphi 0, %s226
      %s230 = sphi 0, %s229
      %s246 = sphi 0, %s230
      %s252 = sphi 0, %s254
      %s255 = sphi 0, %s252
      %s256 = sphi 0, %s255
      %s272 = sphi 0, %s256
      %s278 = sphi 0, %s280
      %s281 = sphi 0, %s278
      %s282 = sphi 0, %s281
      %s298 = sphi 0, %s282
      %s304 = sphi 0, %s306
      %s307 = sphi 0, %s304
      %s308 = sphi 0, %s307
      %s324 = sphi 0, %s308
      %s330 = sphi 0, %s332
      %s333 = sphi 0, %s330
      %s334 = sphi 0, %s333
      %s350 = sphi 0, %s334
      %s356 = sphi 0, %s358
      %s359 = sphi 0, %s356
      %s360 = sphi 0, %s359
      %s376 = sphi 0, %s360
      %s382 = sphi 0, %s384
      %s385 = sphi 0, %s382
      %s386 = sphi 0, %s385
      %s402 = sphi 0, %s386
      %s408 = sphi 0, %s410
      %s411 = sphi 0, %s408
      %s412 = sphi 0, %s411
      %s428 = sphi 0, %s412
      %s434 = sphi 0, %s436
      %s437 = sphi 0, %s434
      %s438 = sphi 0, %s437
      %s454 = sphi 0, %s438
      %s460 = sphi 0, %s462
      %s463 = sphi 0, %s460
      %s464 = sphi 0, %s463
      %s480 = sphi 0, %s464
      %s486 = sphi 0, %s488
      %s489 = sphi 0, %s486
      %s490 = sphi 0, %s489
      %s506 = sphi 0, %s490
    $region4: #{tpu_custom_call.1} parent=1 // loop_header_branch
      %35 = sbr.rel (%p33) target = $region8
    $region5: #{tpu_custom_call.1} parent=1 // loop_body
      %s37 = ssub.s32 %s32, 1
      %s38 = ssub.s32 %s32, 2
      %s45 = sadd.s32 1, %s40
      %p46 = scmp.ge.s32.totalorder %s45, 2
      %s47 = scalar_select %p46, 0, %s45
      %s48 = sadd.s32 1, %s39
      %s49 = scalar_select %p46, %s48, %s39
      %p50 = scmp.ge.s32.totalorder %s49, 2
      %s51 = scalar_select %p50, 0, %s49
      %s52 = ssub.s32 %s39, %s51
      %p53 = scmp.eq.s32.totalorder %s52, 0
      %s55 = sadd.s32 %s54, 1
      %s56 = scalar_select %p53, %s54, %s55
      %p59 = pneg %p53
      %p60 = scmp.eq.s32.totalorder %s32, 3
      %p61 = por %p59, %p60
      %p62 = scmp.ne.s32.totalorder %s54, %s57
      %p63 = scmp.eq.s32.totalorder %s32, 0
      %p64 = por %p62, %p63
      %p65 = scmp.ne.s32.totalorder %s54, %s57
      %p66 = scmp.eq.s32.totalorder %s37, 3
      %p67 = por %p65, %p66
      %p68 = scmp.ne.s32.totalorder %s57, %s58
      %p69 = scmp.eq.s32.totalorder %s37, 0
      %p70 = por %p68, %p69
      %p71 = scmp.ne.s32.totalorder %s57, %s58
      %p72 = scmp.eq.s32.totalorder %s38, 3
      %p73 = por %p71, %p72
      %p75 = scmp.ne.s32.totalorder %s58, %s74
      %p76 = scmp.eq.s32.totalorder %s38, 0
      %p77 = por %p75, %p76
      %s78 = ssub.s32 %s39, %s51
      %p79 = scmp.eq.s32.totalorder %s78, 0
      %s81 = sadd.s32 %s80, 1
      %s82 = scalar_select %p79, %s80, %s81
      %p85 = pneg %p79
      %p86 = scmp.eq.s32.totalorder %s32, 3
      %p87 = por %p85, %p86
      %p88 = scmp.ne.s32.totalorder %s80, %s83
      %p89 = scmp.eq.s32.totalorder %s32, 0
      %p90 = por %p88, %p89
      %p91 = scmp.ne.s32.totalorder %s80, %s83
      %p92 = scmp.eq.s32.totalorder %s37, 3
      %p93 = por %p91, %p92
      %p94 = scmp.ne.s32.totalorder %s83, %s84
      %p95 = scmp.eq.s32.totalorder %s37, 0
      %p96 = por %p94, %p95
      %p97 = scmp.ne.s32.totalorder %s83, %s84
      %p98 = scmp.eq.s32.totalorder %s38, 3
      %p99 = por %p97, %p98
      %p101 = scmp.ne.s32.totalorder %s84, %s100
      %p102 = scmp.eq.s32.totalorder %s38, 0
      %p103 = por %p101, %p102
      %s105 = sadd.s32 %s104, 1
      %p108 = scmp.eq.s32.totalorder %s32, 3
      %p109 = scmp.ne.s32.totalorder %s104, %s106
      %p110 = scmp.eq.s32.totalorder %s32, 0
      %p111 = por %p109, %p110
      %p112 = scmp.ne.s32.totalorder %s104, %s106
      %p113 = scmp.eq.s32.totalorder %s37, 3
      %p114 = por %p112, %p113
      %p115 = scmp.ne.s32.totalorder %s106, %s107
      %p116 = scmp.eq.s32.totalorder %s37, 0
      %p117 = por %p115, %p116
      %p118 = scmp.ne.s32.totalorder %s106, %s107
      %p119 = scmp.eq.s32.totalorder %s38, 3
      %p120 = por %p118, %p119
      %p122 = scmp.ne.s32.totalorder %s107, %s121
      %p123 = scmp.eq.s32.totalorder %s38, 0
      %p124 = por %p122, %p123
      %s126 = sadd.s32 %s125, 1
      %p129 = scmp.eq.s32.totalorder %s32, 3
      %p130 = scmp.ne.s32.totalorder %s125, %s127
      %p131 = scmp.eq.s32.totalorder %s32, 0
      %p132 = por %p130, %p131
      %p133 = scmp.ne.s32.totalorder %s125, %s127
      %p134 = scmp.eq.s32.totalorder %s37, 3
      %p135 = por %p133, %p134
      %p136 = scmp.ne.s32.totalorder %s127, %s128
      %p137 = scmp.eq.s32.totalorder %s37, 0
      %p138 = por %p136, %p137
      %p139 = scmp.ne.s32.totalorder %s127, %s128
      %p140 = scmp.eq.s32.totalorder %s38, 3
      %p141 = por %p139, %p140
      %p143 = scmp.ne.s32.totalorder %s128, %s142
      %p144 = scmp.eq.s32.totalorder %s38, 0
      %p145 = por %p143, %p144
      %s146 = ssub.s32 %s40, %s47
      %p147 = scmp.eq.s32.totalorder %s146, 0
      %s149 = sadd.s32 %s148, 1
      %s150 = scalar_select %p147, %s148, %s149
      %p153 = pneg %p147
      %p154 = scmp.eq.s32.totalorder %s32, 3
      %p155 = por %p153, %p154
      %p156 = scmp.ne.s32.totalorder %s148, %s151
      %p157 = scmp.eq.s32.totalorder %s32, 0
      %p158 = por %p156, %p157
      %p159 = scmp.ne.s32.totalorder %s148, %s151
      %p160 = scmp.eq.s32.totalorder %s37, 3
      %p161 = por %p159, %p160
      %p162 = scmp.ne.s32.totalorder %s151, %s152
      %p163 = scmp.eq.s32.totalorder %s37, 0
      %p164 = por %p162, %p163
      %p165 = scmp.ne.s32.totalorder %s151, %s152
      %p166 = scmp.eq.s32.totalorder %s38, 3
      %p167 = por %p165, %p166
      %p169 = scmp.ne.s32.totalorder %s152, %s168
      %p170 = scmp.eq.s32.totalorder %s38, 0
      %p171 = por %p169, %p170
      %s172 = ssub.s32 %s40, %s47
      %p173 = scmp.eq.s32.totalorder %s172, 0
      %s175 = sadd.s32 %s174, 1
      %s176 = scalar_select %p173, %s174, %s175
      %p179 = pneg %p173
      %p180 = scmp.eq.s32.totalorder %s32, 3
      %p181 = por %p179, %p180
      %p182 = scmp.ne.s32.totalorder %s174, %s177
      %p183 = scmp.eq.s32.totalorder %s32, 0
      %p184 = por %p182, %p183
      %p185 = scmp.ne.s32.totalorder %s174, %s177
      %p186 = scmp.eq.s32.totalorder %s37, 3
      %p187 = por %p185, %p186
      %p188 = scmp.ne.s32.totalorder %s177, %s178
      %p189 = scmp.eq.s32.totalorder %s37, 0
      %p190 = por %p188, %p189
      %p191 = scmp.ne.s32.totalorder %s177, %s178
      %p192 = scmp.eq.s32.totalorder %s38, 3
      %p193 = por %p191, %p192
      %p195 = scmp.ne.s32.totalorder %s178, %s194
      %p196 = scmp.eq.s32.totalorder %s38, 0
      %p197 = por %p195, %p196
      %s198 = ssub.s32 %s40, %s47
      %p199 = scmp.eq.s32.totalorder %s198, 0
      %s201 = sadd.s32 %s200, 1
      %s202 = scalar_select %p199, %s200, %s201
      %p205 = pneg %p199
      %p206 = scmp.eq.s32.totalorder %s32, 3
      %p207 = por %p205, %p206
      %p208 = scmp.ne.s32.totalorder %s200, %s203
      %p209 = scmp.eq.s32.totalorder %s32, 0
      %p210 = por %p208, %p209
      %p211 = scmp.ne.s32.totalorder %s200, %s203
      %p212 = scmp.eq.s32.totalorder %s37, 3
      %p213 = por %p211, %p212
      %p214 = scmp.ne.s32.totalorder %s203, %s204
      %p215 = scmp.eq.s32.totalorder %s37, 0
      %p216 = por %p214, %p215
      %p217 = scmp.ne.s32.totalorder %s203, %s204
      %p218 = scmp.eq.s32.totalorder %s38, 3
      %p219 = por %p217, %p218
      %p221 = scmp.ne.s32.totalorder %s204, %s220
      %p222 = scmp.eq.s32.totalorder %s38, 0
      %p223 = por %p221, %p222
      %s224 = ssub.s32 %s40, %s47
      %p225 = scmp.eq.s32.totalorder %s224, 0
      %s227 = sadd.s32 %s226, 1
      %s228 = scalar_select %p225, %s226, %s227
      %p231 = pneg %p225
      %p232 = scmp.eq.s32.totalorder %s32, 3
      %p233 = por %p231, %p232
      %p234 = scmp.ne.s32.totalorder %s226, %s229
      %p235 = scmp.eq.s32.totalorder %s32, 0
      %p236 = por %p234, %p235
      %p237 = scmp.ne.s32.totalorder %s226, %s229
      %p238 = scmp.eq.s32.totalorder %s37, 3
      %p239 = por %p237, %p238
      %p240 = scmp.ne.s32.totalorder %s229, %s230
      %p241 = scmp.eq.s32.totalorder %s37, 0
      %p242 = por %p240, %p241
      %p243 = scmp.ne.s32.totalorder %s229, %s230
      %p244 = scmp.eq.s32.totalorder %s38, 3
      %p245 = por %p243, %p244
      %p247 = scmp.ne.s32.totalorder %s230, %s246
      %p248 = scmp.eq.s32.totalorder %s38, 0
      %p249 = por %p247, %p248
      %s250 = ssub.s32 %s40, %s47
      %p251 = scmp.eq.s32.totalorder %s250, 0
      %s253 = sadd.s32 %s252, 1
      %s254 = scalar_select %p251, %s252, %s253
      %p257 = pneg %p251
      %p258 = scmp.eq.s32.totalorder %s32, 3
      %p259 = por %p257, %p258
      %p260 = scmp.ne.s32.totalorder %s252, %s255
      %p261 = scmp.eq.s32.totalorder %s32, 0
      %p262 = por %p260, %p261
      %p263 = scmp.ne.s32.totalorder %s252, %s255
      %p264 = scmp.eq.s32.totalorder %s37, 3
      %p265 = por %p263, %p264
      %p266 = scmp.ne.s32.totalorder %s255, %s256
      %p267 = scmp.eq.s32.totalorder %s37, 0
      %p268 = por %p266, %p267
      %p269 = scmp.ne.s32.totalorder %s255, %s256
      %p270 = scmp.eq.s32.totalorder %s38, 3
      %p271 = por %p269, %p270
      %p273 = scmp.ne.s32.totalorder %s256, %s272
      %p274 = scmp.eq.s32.totalorder %s38, 0
      %p275 = por %p273, %p274
      %s276 = ssub.s32 %s40, %s47
      %p277 = scmp.eq.s32.totalorder %s276, 0
      %s279 = sadd.s32 %s278, 1
      %s280 = scalar_select %p277, %s278, %s279
      %p283 = pneg %p277
      %p284 = scmp.eq.s32.totalorder %s32, 3
      %p285 = por %p283, %p284
      %p286 = scmp.ne.s32.totalorder %s278, %s281
      %p287 = scmp.eq.s32.totalorder %s32, 0
      %p288 = por %p286, %p287
      %p289 = scmp.ne.s32.totalorder %s278, %s281
      %p290 = scmp.eq.s32.totalorder %s37, 3
      %p291 = por %p289, %p290
      %p292 = scmp.ne.s32.totalorder %s281, %s282
      %p293 = scmp.eq.s32.totalorder %s37, 0
      %p294 = por %p292, %p293
      %p295 = scmp.ne.s32.totalorder %s281, %s282
      %p296 = scmp.eq.s32.totalorder %s38, 3
      %p297 = por %p295, %p296
      %p299 = scmp.ne.s32.totalorder %s282, %s298
      %p300 = scmp.eq.s32.totalorder %s38, 0
      %p301 = por %p299, %p300
      %s302 = ssub.s32 %s40, %s47
      %p303 = scmp.eq.s32.totalorder %s302, 0
      %s305 = sadd.s32 %s304, 1
      %s306 = scalar_select %p303, %s304, %s305
      %p309 = pneg %p303
      %p310 = scmp.eq.s32.totalorder %s32, 3
      %p311 = por %p309, %p310
      %p312 = scmp.ne.s32.totalorder %s304, %s307
      %p313 = scmp.eq.s32.totalorder %s32, 0
      %p314 = por %p312, %p313
      %p315 = scmp.ne.s32.totalorder %s304, %s307
      %p316 = scmp.eq.s32.totalorder %s37, 3
      %p317 = por %p315, %p316
      %p318 = scmp.ne.s32.totalorder %s307, %s308
      %p319 = scmp.eq.s32.totalorder %s37, 0
      %p320 = por %p318, %p319
      %p321 = scmp.ne.s32.totalorder %s307, %s308
      %p322 = scmp.eq.s32.totalorder %s38, 3
      %p323 = por %p321, %p322
      %p325 = scmp.ne.s32.totalorder %s308, %s324
      %p326 = scmp.eq.s32.totalorder %s38, 0
      %p327 = por %p325, %p326
      %s328 = ssub.s32 %s40, %s47
      %p329 = scmp.eq.s32.totalorder %s328, 0
      %s331 = sadd.s32 %s330, 1
      %s332 = scalar_select %p329, %s330, %s331
      %p335 = pneg %p329
      %p336 = scmp.eq.s32.totalorder %s32, 3
      %p337 = por %p335, %p336
      %p338 = scmp.ne.s32.totalorder %s330, %s333
      %p339 = scmp.eq.s32.totalorder %s32, 0
      %p340 = por %p338, %p339
      %p341 = scmp.ne.s32.totalorder %s330, %s333
      %p342 = scmp.eq.s32.totalorder %s37, 3
      %p343 = por %p341, %p342
      %p344 = scmp.ne.s32.totalorder %s333, %s334
      %p345 = scmp.eq.s32.totalorder %s37, 0
      %p346 = por %p344, %p345
      %p347 = scmp.ne.s32.totalorder %s333, %s334
      %p348 = scmp.eq.s32.totalorder %s38, 3
      %p349 = por %p347, %p348
      %p351 = scmp.ne.s32.totalorder %s334, %s350
      %p352 = scmp.eq.s32.totalorder %s38, 0
      %p353 = por %p351, %p352
      %s354 = ssub.s32 %s40, %s47
      %p355 = scmp.eq.s32.totalorder %s354, 0
      %s357 = sadd.s32 %s356, 1
      %s358 = scalar_select %p355, %s356, %s357
      %p361 = pneg %p355
      %p362 = scmp.eq.s32.totalorder %s32, 3
      %p363 = por %p361, %p362
      %p364 = scmp.ne.s32.totalorder %s356, %s359
      %p365 = scmp.eq.s32.totalorder %s32, 0
      %p366 = por %p364, %p365
      %p367 = scmp.ne.s32.totalorder %s356, %s359
      %p368 = scmp.eq.s32.totalorder %s37, 3
      %p369 = por %p367, %p368
      %p370 = scmp.ne.s32.totalorder %s359, %s360
      %p371 = scmp.eq.s32.totalorder %s37, 0
      %p372 = por %p370, %p371
      %p373 = scmp.ne.s32.totalorder %s359, %s360
      %p374 = scmp.eq.s32.totalorder %s38, 3
      %p375 = por %p373, %p374
      %p377 = scmp.ne.s32.totalorder %s360, %s376
      %p378 = scmp.eq.s32.totalorder %s38, 0
      %p379 = por %p377, %p378
      %s380 = ssub.s32 %s40, %s47
      %p381 = scmp.eq.s32.totalorder %s380, 0
      %s383 = sadd.s32 %s382, 1
      %s384 = scalar_select %p381, %s382, %s383
      %p387 = pneg %p381
      %p388 = scmp.eq.s32.totalorder %s32, 3
      %p389 = por %p387, %p388
      %p390 = scmp.ne.s32.totalorder %s382, %s385
      %p391 = scmp.eq.s32.totalorder %s32, 0
      %p392 = por %p390, %p391
      %p393 = scmp.ne.s32.totalorder %s382, %s385
      %p394 = scmp.eq.s32.totalorder %s37, 3
      %p395 = por %p393, %p394
      %p396 = scmp.ne.s32.totalorder %s385, %s386
      %p397 = scmp.eq.s32.totalorder %s37, 0
      %p398 = por %p396, %p397
      %p399 = scmp.ne.s32.totalorder %s385, %s386
      %p400 = scmp.eq.s32.totalorder %s38, 3
      %p401 = por %p399, %p400
      %p403 = scmp.ne.s32.totalorder %s386, %s402
      %p404 = scmp.eq.s32.totalorder %s38, 0
      %p405 = por %p403, %p404
      %s406 = ssub.s32 %s40, %s47
      %p407 = scmp.eq.s32.totalorder %s406, 0
      %s409 = sadd.s32 %s408, 1
      %s410 = scalar_select %p407, %s408, %s409
      %p413 = pneg %p407
      %p414 = scmp.eq.s32.totalorder %s32, 3
      %p415 = por %p413, %p414
      %p416 = scmp.ne.s32.totalorder %s408, %s411
      %p417 = scmp.eq.s32.totalorder %s32, 0
      %p418 = por %p416, %p417
      %p419 = scmp.ne.s32.totalorder %s408, %s411
      %p420 = scmp.eq.s32.totalorder %s37, 3
      %p421 = por %p419, %p420
      %p422 = scmp.ne.s32.totalorder %s411, %s412
      %p423 = scmp.eq.s32.totalorder %s37, 0
      %p424 = por %p422, %p423
      %p425 = scmp.ne.s32.totalorder %s411, %s412
      %p426 = scmp.eq.s32.totalorder %s38, 3
      %p427 = por %p425, %p426
      %p429 = scmp.ne.s32.totalorder %s412, %s428
      %p430 = scmp.eq.s32.totalorder %s38, 0
      %p431 = por %p429, %p430
      %s432 = ssub.s32 %s40, %s47
      %p433 = scmp.eq.s32.totalorder %s432, 0
      %s435 = sadd.s32 %s434, 1
      %s436 = scalar_select %p433, %s434, %s435
      %p439 = pneg %p433
      %p440 = scmp.eq.s32.totalorder %s32, 3
      %p441 = por %p439, %p440
      %p442 = scmp.ne.s32.totalorder %s434, %s437
      %p443 = scmp.eq.s32.totalorder %s32, 0
      %p444 = por %p442, %p443
      %p445 = scmp.ne.s32.totalorder %s434, %s437
      %p446 = scmp.eq.s32.totalorder %s37, 3
      %p447 = por %p445, %p446
      %p448 = scmp.ne.s32.totalorder %s437, %s438
      %p449 = scmp.eq.s32.totalorder %s37, 0
      %p450 = por %p448, %p449
      %p451 = scmp.ne.s32.totalorder %s437, %s438
      %p452 = scmp.eq.s32.totalorder %s38, 3
      %p453 = por %p451, %p452
      %p455 = scmp.ne.s32.totalorder %s438, %s454
      %p456 = scmp.eq.s32.totalorder %s38, 0
      %p457 = por %p455, %p456
      %s458 = ssub.s32 %s40, %s47
      %p459 = scmp.eq.s32.totalorder %s458, 0
      %s461 = sadd.s32 %s460, 1
      %s462 = scalar_select %p459, %s460, %s461
      %p465 = pneg %p459
      %p466 = scmp.eq.s32.totalorder %s32, 3
      %p467 = por %p465, %p466
      %p468 = scmp.ne.s32.totalorder %s460, %s463
      %p469 = scmp.eq.s32.totalorder %s32, 0
      %p470 = por %p468, %p469
      %p471 = scmp.ne.s32.totalorder %s460, %s463
      %p472 = scmp.eq.s32.totalorder %s37, 3
      %p473 = por %p471, %p472
      %p474 = scmp.ne.s32.totalorder %s463, %s464
      %p475 = scmp.eq.s32.totalorder %s37, 0
      %p476 = por %p474, %p475
      %p477 = scmp.ne.s32.totalorder %s463, %s464
      %p478 = scmp.eq.s32.totalorder %s38, 3
      %p479 = por %p477, %p478
      %p481 = scmp.ne.s32.totalorder %s464, %s480
      %p482 = scmp.eq.s32.totalorder %s38, 0
      %p483 = por %p481, %p482
      %s484 = ssub.s32 %s39, %s51
      %p485 = scmp.eq.s32.totalorder %s484, 0
      %s487 = sadd.s32 %s486, 1
      %s488 = scalar_select %p485, %s486, %s487
      %p491 = pneg %p485
      %p492 = scmp.eq.s32.totalorder %s32, 3
      %p493 = por %p491, %p492
      %p494 = scmp.ne.s32.totalorder %s486, %s489
      %p495 = scmp.eq.s32.totalorder %s32, 0
      %p496 = por %p494, %p495
      %p497 = scmp.ne.s32.totalorder %s486, %s489
      %p498 = scmp.eq.s32.totalorder %s37, 3
      %p499 = por %p497, %p498
      %p500 = scmp.ne.s32.totalorder %s489, %s490
      %p501 = scmp.eq.s32.totalorder %s37, 0
      %p502 = por %p500, %p501
      %p503 = scmp.ne.s32.totalorder %s489, %s490
      %p504 = scmp.eq.s32.totalorder %s38, 3
      %p505 = por %p503, %p504
      %p507 = scmp.ne.s32.totalorder %s490, %s506
      %p508 = scmp.eq.s32.totalorder %s38, 0
      %p509 = por %p507, %p508
      %p510 = scmp.le.s32.totalorder 1, %s32
      %p511 = scmp.lt.s32.totalorder %s32, 5
      %p512 = pnand %p510, %p511
      %p513 = pneg %p512
      // Predicated region
      $region9: #{tpu_custom_call.1} parent=5 // pred_check
        _
      $region10: #{tpu_custom_call.1} parent=5 // pred_check_branch
        %515 = sbr.rel (%p512) target = $region12
      $region11: #{tpu_custom_call.1} parent=5 // pred_region
        %s516 = ssub.s32 %s32, 1
        // Predicated region
        $region13: #{tpu_custom_call.1} parent=11 // pred_check
          %p517 = pneg %p117
        $region14: #{tpu_custom_call.1} parent=11 // pred_check_branch
          %519 = sbr.rel (%p517) target = $region16
        $region15: #{tpu_custom_call.1} parent=11 // pred_region
          _
        $region16: #{tpu_custom_call.1} parent=11 // pred_fallthru
          _
        // Predicated region
        $region17: #{tpu_custom_call.1} parent=11 // pred_check
          %p520 = pneg %p138
        $region18: #{tpu_custom_call.1} parent=11 // pred_check_branch
          %522 = sbr.rel (%p520) target = $region20
        $region19: #{tpu_custom_call.1} parent=11 // pred_region
          _
        $region20: #{tpu_custom_call.1} parent=11 // pred_fallthru
          _
      $region12: #{tpu_custom_call.1} parent=5 // pred_fallthru
        _
      %p523 = scmp.lt.s32.totalorder %s32, 4
      // Predicated region
      $region21: #{tpu_custom_call.1} parent=5 // pred_check
        %p524 = pneg %p523
      $region22: #{tpu_custom_call.1} parent=5 // pred_check_branch
        %526 = sbr.rel (%p524) target = $region24
      $region23: #{tpu_custom_call.1} parent=5 // pred_region
        // Predicated region
        $region25: #{tpu_custom_call.1} parent=23 // pred_check
          %p527 = pneg %p64
        $region26: #{tpu_custom_call.1} parent=23 // pred_check_branch
          %529 = sbr.rel (%p527) target = $region28
        $region27: #{tpu_custom_call.1} parent=23 // pred_region
          %s530 = sand.u32 %s54, 1
          %s531 = scalar_lea.sflag [#allocation4], %s530
          %s532 = sand.u32 %s54, 1
          %s533 = smul.addr %s532, 8
          %s534 = scalar_lea.vmem [#allocation3], %s533
          %s536 = ssub.s32 128, 128
          %537 = vsyncadd %s531, %s536
          %s538 = smul.addr %s39, 128
          %s539 = scalar_lea.hbm %s0, %s538
          %s541 = sshll.u32 %s534, 4
          %s542 = int_to_ptr.vmem [resolvable:$true] %s541
          %544 = dma.hbm_to_vmem [thread:$0]  %s539, 128, %s542, %s531
        $region28: #{tpu_custom_call.1} parent=23 // pred_fallthru
          _
        // Predicated region
        $region29: #{tpu_custom_call.1} parent=23 // pred_check
          %p545 = pneg %p90
        $region30: #{tpu_custom_call.1} parent=23 // pred_check_branch
          %547 = sbr.rel (%p545) target = $region32
        $region31: #{tpu_custom_call.1} parent=23 // pred_region
          %p548 = scmp.lt.s32.totalorder %s39, 1
          %s549 = scalar_select %p548, %s39, 1
          %s550 = scalar_lea.vmem %s1, %s549
        $region32: #{tpu_custom_call.1} parent=23 // pred_fallthru
          _
        // Predicated region
        $region33: #{tpu_custom_call.1} parent=23 // pred_check
          %p551 = pneg %p158
        $region34: #{tpu_custom_call.1} parent=23 // pred_check_branch
          %553 = sbr.rel (%p551) target = $region36
        $region35: #{tpu_custom_call.1} parent=23 // pred_region
          %p554 = scmp.lt.s32.totalorder %s40, 1
          %s555 = scalar_select %p554, %s40, 1
          %s556 = smul.addr %s555, 4
          %s557 = smul.addr %s556, 4
          %s558 = scalar_lea.vmem %s4, %s557
        $region36: #{tpu_custom_call.1} parent=23 // pred_fallthru
          _
        // Predicated region
        $region37: #{tpu_custom_call.1} parent=23 // pred_check
          %p559 = pneg %p184
        $region38: #{tpu_custom_call.1} parent=23 // pred_check_branch
          %561 = sbr.rel (%p559) target = $region40
        $region39: #{tpu_custom_call.1} parent=23 // pred_region
          %p562 = scmp.lt.s32.totalorder %s40, 1
          %s563 = scalar_select %p562, %s40, 1
          %s564 = smul.addr %s563, 4
          %s565 = smul.addr %s564, 4
          %s566 = scalar_lea.vmem %s5, %s565
        $region40: #{tpu_custom_call.1} parent=23 // pred_fallthru
          _
        // Predicated region
        $region41: #{tpu_custom_call.1} parent=23 // pred_check
          %p567 = pneg %p210
        $region42: #{tpu_custom_call.1} parent=23 // pred_check_branch
          %569 = sbr.rel (%p567) target = $region44
        $region43: #{tpu_custom_call.1} parent=23 // pred_region
          %p570 = scmp.lt.s32.totalorder %s40, 1
          %s571 = scalar_select %p570, %s40, 1
          %s572 = smul.addr %s571, 4
          %s573 = smul.addr %s572, 4
          %s574 = scalar_lea.vmem %s6, %s573
        $region44: #{tpu_custom_call.1} parent=23 // pred_fallthru
          _
        // Predicated region
        $region45: #{tpu_custom_call.1} parent=23 // pred_check
          %p575 = pneg %p236
        $region46: #{tpu_custom_call.1} parent=23 // pred_check_branch
          %577 = sbr.rel (%p575) target = $region48
        $region47: #{tpu_custom_call.1} parent=23 // pred_region
          %s578 = sand.u32 %s32, 1
          %s579 = scalar_lea.sflag [#allocation7], %s578
          %s580 = sand.u32 %s226, 1
          %s581 = smul.addr %s580, 16
          %s582 = scalar_lea.vmem [#allocation6], %s581
          %s584 = ssub.s32 256, 256
          %585 = vsyncadd %s579, %s584
          %s586 = smul.addr %s40, 4
          %s587 = smul.addr %s586, 64
          %s588 = scalar_lea.hbm %s7, %s587
          %s589 = sshll.u32 %s582, 4
          %s590 = int_to_ptr.vmem [resolvable:$true] %s589
          %595 = dma.hbm_to_vmem [thread:$0]  %s588, 256, %s590, %s579, 64, 64, 4
        $region48: #{tpu_custom_call.1} parent=23 // pred_fallthru
          _
        // Predicated region
        $region49: #{tpu_custom_call.1} parent=23 // pred_check
          %p596 = pneg %p262
        $region50: #{tpu_custom_call.1} parent=23 // pred_check_branch
          %598 = sbr.rel (%p596) target = $region52
        $region51: #{tpu_custom_call.1} parent=23 // pred_region
          %p599 = scmp.lt.s32.totalorder %s40, 1
          %s600 = scalar_select %p599, %s40, 1
          %s601 = scalar_lea.vmem %s8, %s600
        $region52: #{tpu_custom_call.1} parent=23 // pred_fallthru
          _
        // Predicated region
        $region53: #{tpu_custom_call.1} parent=23 // pred_check
          %p602 = pneg %p288
        $region54: #{tpu_custom_call.1} parent=23 // pred_check_branch
          %604 = sbr.rel (%p602) target = $region56
        $region55: #{tpu_custom_call.1} parent=23 // pred_region
          %p605 = scmp.lt.s32.totalorder %s40, 1
          %s606 = scalar_select %p605, %s40, 1
          %s607 = scalar_lea.vmem %s9, %s606
        $region56: #{tpu_custom_call.1} parent=23 // pred_fallthru
          _
        // Predicated region
        $region57: #{tpu_custom_call.1} parent=23 // pred_check
          %p608 = pneg %p314
        $region58: #{tpu_custom_call.1} parent=23 // pred_check_branch
          %610 = sbr.rel (%p608) target = $region60
        $region59: #{tpu_custom_call.1} parent=23 // pred_region
          %p611 = scmp.lt.s32.totalorder %s40, 1
          %s612 = scalar_select %p611, %s40, 1
          %s613 = scalar_lea.vmem %s10, %s612
        $region60: #{tpu_custom_call.1} parent=23 // pred_fallthru
          _
        // Predicated region
        $region61: #{tpu_custom_call.1} parent=23 // pred_check
          %p614 = pneg %p340
        $region62: #{tpu_custom_call.1} parent=23 // pred_check_branch
          %616 = sbr.rel (%p614) target = $region64
        $region63: #{tpu_custom_call.1} parent=23 // pred_region
          %s617 = sand.u32 %s32, 1
          %s618 = scalar_lea.sflag [#allocation7], %s617
          %s619 = sand.u32 %s330, 1
          %s620 = smul.addr %s619, 16
          %s621 = scalar_lea.vmem [#allocation8], %s620
          %s623 = ssub.s32 256, 256
          %624 = vsyncadd %s618, %s623
          %s625 = smul.addr %s40, 4
          %s626 = smul.addr %s625, 64
          %s627 = scalar_lea.hbm %s11, %s626
          %s628 = sshll.u32 %s621, 4
          %s629 = int_to_ptr.vmem [resolvable:$true] %s628
          %634 = dma.hbm_to_vmem [thread:$0]  %s627, 256, %s629, %s618, 64, 64, 4
        $region64: #{tpu_custom_call.1} parent=23 // pred_fallthru
          _
        // Predicated region
        $region65: #{tpu_custom_call.1} parent=23 // pred_check
          %p635 = pneg %p366
        $region66: #{tpu_custom_call.1} parent=23 // pred_check_branch
          %637 = sbr.rel (%p635) target = $region68
        $region67: #{tpu_custom_call.1} parent=23 // pred_region
          %p638 = scmp.lt.s32.totalorder %s40, 1
          %s639 = scalar_select %p638, %s40, 1
          %s640 = scalar_lea.vmem %s12, %s639
        $region68: #{tpu_custom_call.1} parent=23 // pred_fallthru
          _
        // Predicated region
        $region69: #{tpu_custom_call.1} parent=23 // pred_check
          %p641 = pneg %p392
        $region70: #{tpu_custom_call.1} parent=23 // pred_check_branch
          %643 = sbr.rel (%p641) target = $region72
        $region71: #{tpu_custom_call.1} parent=23 // pred_region
          %p644 = scmp.lt.s32.totalorder %s40, 1
          %s645 = scalar_select %p644, %s40, 1
          %s646 = smul.addr %s645, 16
          %s647 = smul.addr %s646, 4
          %s648 = scalar_lea.vmem %s13, %s647
        $region72: #{tpu_custom_call.1} parent=23 // pred_fallthru
          _
        // Predicated region
        $region73: #{tpu_custom_call.1} parent=23 // pred_check
          %p649 = pneg %p418
        $region74: #{tpu_custom_call.1} parent=23 // pred_check_branch
          %651 = sbr.rel (%p649) target = $region76
        $region75: #{tpu_custom_call.1} parent=23 // pred_region
          %p652 = scmp.lt.s32.totalorder %s40, 1
          %s653 = scalar_select %p652, %s40, 1
          %s654 = scalar_lea.vmem %s14, %s653
        $region76: #{tpu_custom_call.1} parent=23 // pred_fallthru
          _
        // Predicated region
        $region77: #{tpu_custom_call.1} parent=23 // pred_check
          %p655 = pneg %p444
        $region78: #{tpu_custom_call.1} parent=23 // pred_check_branch
          %657 = sbr.rel (%p655) target = $region80
        $region79: #{tpu_custom_call.1} parent=23 // pred_region
          %p658 = scmp.lt.s32.totalorder %s40, 1
          %s659 = scalar_select %p658, %s40, 1
          %s660 = scalar_lea.vmem %s15, %s659
        $region80: #{tpu_custom_call.1} parent=23 // pred_fallthru
          _
        // Predicated region
        $region81: #{tpu_custom_call.1} parent=23 // pred_check
          %p661 = pneg %p470
        $region82: #{tpu_custom_call.1} parent=23 // pred_check_branch
          %663 = sbr.rel (%p661) target = $region84
        $region83: #{tpu_custom_call.1} parent=23 // pred_region
          %p664 = scmp.lt.s32.totalorder %s40, 1
          %s665 = scalar_select %p664, %s40, 1
          %s666 = scalar_lea.vmem %s16, %s665
        $region84: #{tpu_custom_call.1} parent=23 // pred_fallthru
          _
      $region24: #{tpu_custom_call.1} parent=5 // pred_fallthru
        _
      %p667 = scmp.le.s32.totalorder 1, %s32
      %p668 = scmp.lt.s32.totalorder %s32, 5
      %p669 = pnand %p667, %p668
      %p670 = pneg %p669
      // Predicated region
      $region85: #{tpu_custom_call.1} parent=5 // pred_check
        _
      $region86: #{tpu_custom_call.1} parent=5 // pred_check_branch
        %672 = sbr.rel (%p669) target = $region88
      $region87: #{tpu_custom_call.1} parent=5 // pred_region
        %s673 = ssub.s32 %s32, 1
        %s674 = sand.u32 %s57, 1
        %s675 = scalar_lea.sflag [#allocation4], %s674
        %s676 = sand.u32 %s57, 1
        %s677 = smul.addr %s676, 8
        %s678 = scalar_lea.vmem [#allocation3], %s677
        // Predicated region
        $region89: #{tpu_custom_call.1} parent=87 // pred_check
          %p679 = pneg %p70
        $region90: #{tpu_custom_call.1} parent=87 // pred_check_branch
          %681 = sbr.rel (%p679) target = $region92
        $region91: #{tpu_custom_call.1} parent=87 // pred_region
          %682 = dma.done %s675, 128
        $region92: #{tpu_custom_call.1} parent=87 // pred_fallthru
          _
        %s683 = sand.u32 %s37, 1
        %s684 = scalar_lea.sflag [#allocation7], %s683
        %s685 = sand.u32 %s229, 1
        %s686 = smul.addr %s685, 16
        %s687 = scalar_lea.vmem [#allocation6], %s686
        // Predicated region
        $region93: #{tpu_custom_call.1} parent=87 // pred_check
          %p688 = pneg %p242
        $region94: #{tpu_custom_call.1} parent=87 // pred_check_branch
          %690 = sbr.rel (%p688) target = $region96
        $region95: #{tpu_custom_call.1} parent=87 // pred_region
          %691 = dma.done %s684, 256
        $region96: #{tpu_custom_call.1} parent=87 // pred_fallthru
          _
        %s692 = sand.u32 %s37, 1
        %s693 = scalar_lea.sflag [#allocation7], %s692
        %s694 = sand.u32 %s333, 1
        %s695 = smul.addr %s694, 16
        %s696 = scalar_lea.vmem [#allocation8], %s695
        // Predicated region
        $region97: #{tpu_custom_call.1} parent=87 // pred_check
          %p697 = pneg %p346
        $region98: #{tpu_custom_call.1} parent=87 // pred_check_branch
          %699 = sbr.rel (%p697) target = $region100
        $region99: #{tpu_custom_call.1} parent=87 // pred_region
          %700 = dma.done %s693, 256
        $region100: #{tpu_custom_call.1} parent=87 // pred_fallthru
          _
        %s701 = sand.u32 %s57, 1
        %s702 = scalar_lea.sflag [#allocation4], %s701
        %s703 = sand.u32 %s57, 1
        %s704 = smul.addr %s703, 8
        %s705 = scalar_lea.vmem [#allocation3], %s704
        %p706 = pneg %p70
        %p707 = pneg %p67
        %p708 = scmp.lt.s32.totalorder %s41, 1
        %s709 = scalar_select %p708, %s41, 1
        %s710 = scalar_lea.vmem %s1, %s709
        %p711 = pneg %p96
        %p712 = pneg %p93
        %p713 = pneg %p117
        %p714 = pneg %p114
        %p715 = pneg %p138
        %p716 = pneg %p135
        %p717 = scmp.lt.s32.totalorder %s42, 1
        %s718 = scalar_select %p717, %s42, 1
        %s719 = smul.addr %s718, 4
        %s720 = smul.addr %s719, 4
        %s721 = scalar_lea.vmem %s4, %s720
        %p722 = pneg %p164
        %p723 = pneg %p161
        %p724 = scmp.lt.s32.totalorder %s42, 1
        %s725 = scalar_select %p724, %s42, 1
        %s726 = smul.addr %s725, 4
        %s727 = smul.addr %s726, 4
        %s728 = scalar_lea.vmem %s5, %s727
        %p729 = pneg %p190
        %p730 = pneg %p187
        %p731 = scmp.lt.s32.totalorder %s42, 1
        %s732 = scalar_select %p731, %s42, 1
        %s733 = smul.addr %s732, 4
        %s734 = smul.addr %s733, 4
        %s735 = scalar_lea.vmem %s6, %s734
        %p736 = pneg %p216
        %p737 = pneg %p213
        %s738 = sand.u32 %s37, 1
        %s739 = scalar_lea.sflag [#allocation7], %s738
        %s740 = sand.u32 %s229, 1
        %s741 = smul.addr %s740, 16
        %s742 = scalar_lea.vmem [#allocation6], %s741
        %p743 = pneg %p242
        %p744 = pneg %p239
        %p745 = scmp.lt.s32.totalorder %s42, 1
        %s746 = scalar_select %p745, %s42, 1
        %s747 = scalar_lea.vmem %s8, %s746
        %p748 = pneg %p268
        %p749 = pneg %p265
        %p750 = scmp.lt.s32.totalorder %s42, 1
        %s751 = scalar_select %p750, %s42, 1
        %s752 = scalar_lea.vmem %s9, %s751
        %p753 = pneg %p294
        %p754 = pneg %p291
        %p755 = scmp.lt.s32.totalorder %s42, 1
        %s756 = scalar_select %p755, %s42, 1
        %s757 = scalar_lea.vmem %s10, %s756
        %p758 = pneg %p320
        %p759 = pneg %p317
        %s760 = sand.u32 %s37, 1
        %s761 = scalar_lea.sflag [#allocation7], %s760
        %s762 = sand.u32 %s333, 1
        %s763 = smul.addr %s762, 16
        %s764 = scalar_lea.vmem [#allocation8], %s763
        %p765 = pneg %p346
        %p766 = pneg %p343
        %p767 = scmp.lt.s32.totalorder %s42, 1
        %s768 = scalar_select %p767, %s42, 1
        %s769 = scalar_lea.vmem %s12, %s768
        %p770 = pneg %p372
        %p771 = pneg %p369
        %p772 = scmp.lt.s32.totalorder %s42, 1
        %s773 = scalar_select %p772, %s42, 1
        %s774 = smul.addr %s773, 16
        %s775 = smul.addr %s774, 4
        %s776 = scalar_lea.vmem %s13, %s775
        %p777 = pneg %p398
        %p778 = pneg %p395
        %p779 = scmp.lt.s32.totalorder %s42, 1
        %s780 = scalar_select %p779, %s42, 1
        %s781 = scalar_lea.vmem %s14, %s780
        %p782 = pneg %p424
        %p783 = pneg %p421
        %p784 = scmp.lt.s32.totalorder %s42, 1
        %s785 = scalar_select %p784, %s42, 1
        %s786 = scalar_lea.vmem %s15, %s785
        %p787 = pneg %p450
        %p788 = pneg %p447
        %p789 = scmp.lt.s32.totalorder %s42, 1
        %s790 = scalar_select %p789, %s42, 1
        %s791 = scalar_lea.vmem %s16, %s790
        %p792 = pneg %p476
        %p793 = pneg %p473
        %p794 = pneg %p502
        %p795 = pneg %p499
        %s796 = sand.u32 %s489, 1
        %s797 = scalar_lea.sflag [#allocation5], %s796
        %s798 = sand.u32 %s489, 1
        %s799 = smul.addr %s798, 8
        %s800 = scalar_lea.vmem [#allocation9], %s799
        %p801 = scmp.lt.s32.totalorder %s41, 1
        %s802 = scalar_select %p801, %s41, 1
        %s803 = scalar_lea.vmem %s1, %s802
        %p804 = scmp.lt.s32.totalorder %s42, 1
        %s805 = scalar_select %p804, %s42, 1
        %s806 = smul.addr %s805, 4
        %s807 = smul.addr %s806, 4
        %s808 = scalar_lea.vmem %s4, %s807
        %p809 = scmp.lt.s32.totalorder %s42, 1
        %s810 = scalar_select %p809, %s42, 1
        %s811 = smul.addr %s810, 4
        %s812 = smul.addr %s811, 4
        %s813 = scalar_lea.vmem %s5, %s812
        %p814 = scmp.lt.s32.totalorder %s42, 1
        %s815 = scalar_select %p814, %s42, 1
        %s816 = smul.addr %s815, 4
        %s817 = smul.addr %s816, 4
        %s818 = scalar_lea.vmem %s6, %s817
        %p819 = scmp.lt.s32.totalorder %s42, 1
        %s820 = scalar_select %p819, %s42, 1
        %s821 = scalar_lea.vmem %s8, %s820
        %p822 = scmp.lt.s32.totalorder %s42, 1
        %s823 = scalar_select %p822, %s42, 1
        %s824 = scalar_lea.vmem %s9, %s823
        %p825 = scmp.lt.s32.totalorder %s42, 1
        %s826 = scalar_select %p825, %s42, 1
        %s827 = scalar_lea.vmem %s10, %s826
        %p828 = scmp.lt.s32.totalorder %s42, 1
        %s829 = scalar_select %p828, %s42, 1
        %s830 = scalar_lea.vmem %s12, %s829
        %p831 = scmp.lt.s32.totalorder %s42, 1
        %s832 = scalar_select %p831, %s42, 1
        %s833 = smul.addr %s832, 16
        %s834 = smul.addr %s833, 4
        %s835 = scalar_lea.vmem %s13, %s834
        %p836 = scmp.lt.s32.totalorder %s42, 1
        %s837 = scalar_select %p836, %s42, 1
        %s838 = scalar_lea.vmem %s14, %s837
        %p839 = scmp.lt.s32.totalorder %s42, 1
        %s840 = scalar_select %p839, %s42, 1
        %s841 = scalar_lea.vmem %s15, %s840
        %p842 = scmp.lt.s32.totalorder %s42, 1
        %s843 = scalar_select %p842, %s42, 1
        %s844 = scalar_lea.vmem %s16, %s843
        %p846 = scmp.eq.s32.totalorder %s42, 0
        // Predicated region
        $region101: #{tpu_custom_call.1} parent=87 // pred_check
          %p847 = pneg %p846
        $region102: #{tpu_custom_call.1} parent=87 // pred_check_branch
          %849 = sbr.rel (%p847) target = $region104
        $region103: #{tpu_custom_call.1} parent=87 // pred_region
          %v850 = vld [vmem:[%s678] sm:$0xff]
          %vm851 = vcmask 261120
          %852 = vst.msk [vmem:[#allocation2] sm:$0xff] %vm851, %v850
        $region104: #{tpu_custom_call.1} parent=87 // pred_fallthru
          _
        %v853 = vld [vmem:[#allocation2] sm:$0xff]
        %v854 = vpack.c.bf16 %v853, %v853
        %v855 = vld [vmem:[%s808] sm:$0xf]
        %v856 = vld [vmem:[%s808 + $0x4] sm:$0xf]
        %v857 = vld [vmem:[%s808 + $0x8] sm:$0xf]
        %v858 = vld [vmem:[%s808 + $0xc] sm:$0xf]
        %v863 = vunpack.c.l.b16 %v855
        %v864 = vunpack.c.l.b16 %v856
        %v865 = vunpack.c.l.b16 %v857
        %v866 = vunpack.c.l.b16 %v858
        %v867 = vpack.c.b16 %v864, %v863
        %v868 = vpack.c.b16 %v866, %v865
        %vm871 = vcmask 261120
        %v873 = vsel %vm871, %v854, 0
        %875 = vmatprep.subr.bf16.mxu0 0
        %876 = vmatpush1.bf16.msra.mxu0 %v867
        %877 = vmatprep.subr.bf16.mxu0 0
        %878 = vmatpush1.bf16.msra.mxu0 %v868
        %879 = vmatprep.subr.bf16.mxu0 0
        %880 = vmatpush1.bf16.msra.mxu0 0
        %881 = vmatprep.subr.bf16.mxu0 0
        %882 = vmatpush1.bf16.msra.mxu0 0
        %883 = vmatprep.subr.bf16.mxu0 0
        %884 = vmatpush1.bf16.msra.mxu0 0
        %885 = vmatprep.subr.bf16.mxu0 0
        %886 = vmatpush1.bf16.msra.mxu0 0
        %887 = vmatprep.subr.bf16.mxu0 0
        %888 = vmatpush1.bf16.msra.mxu0 0
        %889 = vmatprep.subr.bf16.mxu0 0
        %890 = vmatpush1.bf16.msra.mxu0 0
        %891 = vmatprep.subr.bf16.mxu0 0
        %892 = vmatpush1.bf16.msra.mxu0 0
        %893 = vmatprep.subr.bf16.mxu0 0
        %894 = vmatpush1.bf16.msra.mxu0 0
        %895 = vmatprep.subr.bf16.mxu0 0
        %896 = vmatpush1.bf16.msra.mxu0 0
        %897 = vmatprep.subr.bf16.mxu0 0
        %898 = vmatpush1.bf16.msra.mxu0 0
        %899 = vmatprep.subr.bf16.mxu0 0
        %900 = vmatpush1.bf16.msra.mxu0 0
        %901 = vmatprep.subr.bf16.mxu0 0
        %902 = vmatpush1.bf16.msra.mxu0 0
        %903 = vmatprep.subr.bf16.mxu0 0
        %904 = vmatpush1.bf16.msra.mxu0 0
        %905 = vmatprep.subr.bf16.mxu0 0
        %906 = vmatpush1.bf16.msra.mxu0 0
        %907 = vmatprep.mubr.bf16.mxu0 0
        %908 = vmatmul.mubr.bf16.gmra.mrb[0].mxu0 %v873
        %v909 = vpop.f32.mrb[0].mxu0
        %v910 = vadd.f32 0.0, %v909
        %v911 = vpop.f32.mrb[0].mxu0
        %v912 = vpop.f32.mrb[0].mxu0
        %v913 = vpop.f32.mrb[0].mxu0
        %914 = vdwg.mxu0
        %v915 = vpack.c.bf16 %v910, %v910
        %v916 = vld [vmem:[%s2] sm:$0xff]
        %v917 = vld [vmem:[%s2 + $0x8] sm:$0xff]
        %v918 = vld [vmem:[%s2 + $0x10] sm:$0xff]
        %v919 = vld [vmem:[%s2 + $0x18] sm:$0xff]
        %v920 = vmul.f32 %v853, %v916
        %v921 = vmul.f32 %v853, %v917
        %v922 = vmul.f32 %v853, %v918
        %v923 = vmul.f32 %v853, %v919
        %v924 = vpack.c.bf16 %v921, %v920
        %v925 = vpack.c.bf16 %v923, %v922
        %v926 = vld [vmem:[%s813] sm:$0xf]
        %v927 = vld [vmem:[%s813 + $0x4] sm:$0xf]
        %v928 = vld [vmem:[%s813 + $0x8] sm:$0xf]
        %v929 = vld [vmem:[%s813 + $0xc] sm:$0xf]
        %v934 = vunpack.c.l.b16 %v926
        %v935 = vunpack.c.l.b16 %v927
        %v936 = vunpack.c.l.b16 %v928
        %v937 = vunpack.c.l.b16 %v929
        %v938 = vpack.c.b16 %v935, %v934
        %v939 = vpack.c.b16 %v937, %v936
        %v943 = vsel %vm871, %v924, 0
        %v946 = vsel %vm871, %v925, 0
        %948 = vmatprep.subr.bf16.mxu0 0
        %949 = vmatpush1.bf16.msra.mxu0 %v938
        %950 = vmatprep.subr.bf16.mxu0 0
        %951 = vmatpush1.bf16.msra.mxu0 %v939
        %952 = vmatprep.subr.bf16.mxu0 0
        %953 = vmatpush1.bf16.msra.mxu0 0
        %954 = vmatprep.subr.bf16.mxu0 0
        %955 = vmatpush1.bf16.msra.mxu0 0
        %956 = vmatprep.subr.bf16.mxu0 0
        %957 = vmatpush1.bf16.msra.mxu0 0
        %958 = vmatprep.subr.bf16.mxu0 0
        %959 = vmatpush1.bf16.msra.mxu0 0
        %960 = vmatprep.subr.bf16.mxu0 0
        %961 = vmatpush1.bf16.msra.mxu0 0
        %962 = vmatprep.subr.bf16.mxu0 0
        %963 = vmatpush1.bf16.msra.mxu0 0
        %964 = vmatprep.subr.bf16.mxu0 0
        %965 = vmatpush1.bf16.msra.mxu0 0
        %966 = vmatprep.subr.bf16.mxu0 0
        %967 = vmatpush1.bf16.msra.mxu0 0
        %968 = vmatprep.subr.bf16.mxu0 0
        %969 = vmatpush1.bf16.msra.mxu0 0
        %970 = vmatprep.subr.bf16.mxu0 0
        %971 = vmatpush1.bf16.msra.mxu0 0
        %972 = vmatprep.subr.bf16.mxu0 0
        %973 = vmatpush1.bf16.msra.mxu0 0
        %974 = vmatprep.subr.bf16.mxu0 0
        %975 = vmatpush1.bf16.msra.mxu0 0
        %976 = vmatprep.subr.bf16.mxu0 0
        %977 = vmatpush1.bf16.msra.mxu0 0
        %978 = vmatprep.subr.bf16.mxu0 0
        %979 = vmatpush1.bf16.msra.mxu0 0
        %980 = vmatprep.mubr.bf16.mxu0 0
        %981 = vmatmul.mubr.bf16.gmra.mrb[0].mxu0 %v943
        %v982 = vpop.f32.mrb[0].mxu0
        %v983 = vadd.f32 0.0, %v982
        %v984 = vpop.f32.mrb[0].mxu0
        %v985 = vpop.f32.mrb[0].mxu0
        %v986 = vadd.f32 0.0, %v985
        %v987 = vpop.f32.mrb[0].mxu0
        %988 = vmatprep.mubr.bf16.mxu0 0
        %989 = vmatmul.mubr.bf16.gmra.mrb[0].mxu0 %v946
        %v990 = vpop.f32.mrb[0].mxu0
        %v991 = vadd.f32 0.0, %v990
        %v992 = vpop.f32.mrb[0].mxu0
        %v993 = vpop.f32.mrb[0].mxu0
        %v994 = vadd.f32 0.0, %v993
        %v995 = vpop.f32.mrb[0].mxu0
        %996 = vdwg.mxu0
        %v997 = vpack.c.bf16 %v986, %v983
        %v998 = vpack.c.bf16 %v994, %v991
        %v999 = vld [vmem:[%s818] sm:$0xf]
        %v1000 = vld [vmem:[%s818 + $0x4] sm:$0xf]
        %v1001 = vld [vmem:[%s818 + $0x8] sm:$0xf]
        %v1002 = vld [vmem:[%s818 + $0xc] sm:$0xf]
        %v1007 = vunpack.c.l.b16 %v999
        %v1008 = vunpack.c.l.b16 %v1000
        %v1009 = vunpack.c.l.b16 %v1001
        %v1010 = vunpack.c.l.b16 %v1002
        %v1011 = vpack.c.b16 %v1008, %v1007
        %v1012 = vpack.c.b16 %v1010, %v1009
        %1015 = vmatprep.subr.bf16.mxu0 0
        %1016 = vmatpush1.bf16.msra.mxu0 %v1011
        %1017 = vmatprep.subr.bf16.mxu0 0
        %1018 = vmatpush1.bf16.msra.mxu0 %v1012
        %1019 = vmatprep.subr.bf16.mxu0 0
        %1020 = vmatpush1.bf16.msra.mxu0 0
        %1021 = vmatprep.subr.bf16.mxu0 0
        %1022 = vmatpush1.bf16.msra.mxu0 0
        %1023 = vmatprep.subr.bf16.mxu0 0
        %1024 = vmatpush1.bf16.msra.mxu0 0
        %1025 = vmatprep.subr.bf16.mxu0 0
        %1026 = vmatpush1.bf16.msra.mxu0 0
        %1027 = vmatprep.subr.bf16.mxu0 0
        %1028 = vmatpush1.bf16.msra.mxu0 0
        %1029 = vmatprep.subr.bf16.mxu0 0
        %1030 = vmatpush1.bf16.msra.mxu0 0
        %1031 = vmatprep.subr.bf16.mxu0 0
        %1032 = vmatpush1.bf16.msra.mxu0 0
        %1033 = vmatprep.subr.bf16.mxu0 0
        %1034 = vmatpush1.bf16.msra.mxu0 0
        %1035 = vmatprep.subr.bf16.mxu0 0
        %1036 = vmatpush1.bf16.msra.mxu0 0
        %1037 = vmatprep.subr.bf16.mxu0 0
        %1038 = vmatpush1.bf16.msra.mxu0 0
        %1039 = vmatprep.subr.bf16.mxu0 0
        %1040 = vmatpush1.bf16.msra.mxu0 0
        %1041 = vmatprep.subr.bf16.mxu0 0
        %1042 = vmatpush1.bf16.msra.mxu0 0
        %1043 = vmatprep.subr.bf16.mxu0 0
        %1044 = vmatpush1.bf16.msra.mxu0 0
        %1045 = vmatprep.subr.bf16.mxu0 0
        %1046 = vmatpush1.bf16.msra.mxu0 0
        %1047 = vmatprep.mubr.bf16.mxu0 0
        %1048 = vmatmul.mubr.bf16.gmra.mrb[0].mxu0 %v943
        %v1049 = vpop.f32.mrb[0].mxu0
        %v1050 = vadd.f32 0.0, %v1049
        %v1051 = vpop.f32.mrb[0].mxu0
        %v1052 = vpop.f32.mrb[0].mxu0
        %v1053 = vadd.f32 0.0, %v1052
        %v1054 = vpop.f32.mrb[0].mxu0
        %1055 = vmatprep.mubr.bf16.mxu0 0
        %1056 = vmatmul.mubr.bf16.gmra.mrb[0].mxu0 %v946
        %v1057 = vpop.f32.mrb[0].mxu0
        %v1058 = vadd.f32 0.0, %v1057
        %v1059 = vpop.f32.mrb[0].mxu0
        %v1060 = vpop.f32.mrb[0].mxu0
        %v1061 = vadd.f32 0.0, %v1060
        %v1062 = vpop.f32.mrb[0].mxu0
        %1063 = vdwg.mxu0
        %v1064 = vpack.c.bf16 %v1053, %v1050
        %v1065 = vpack.c.bf16 %v1061, %v1058
        %v1067 = vsel %vm871, %v915, 0
        %v1070 = vsel %vm871, %v997, 0
        %v1073 = vsel %vm871, %v998, 0
        %1075 = vmatprep.subr.bf16.mxu0 0
        %1076 = vmatpush1.bf16.xpose.msra.mxu0 %v1070
        %1077 = vmatprep.subr.bf16.mxu0 0
        %1078 = vmatpush1.bf16.xpose.msra.mxu0 %v1073
        %1079 = vmatprep.subr.bf16.mxu0 0
        %1080 = vmatpush1.bf16.xpose.msra.mxu0 0
        %1081 = vmatprep.subr.bf16.mxu0 0
        %1082 = vmatpush1.bf16.xpose.msra.mxu0 0
        %1083 = vmatprep.subr.bf16.mxu0 0
        %1084 = vmatpush1.bf16.xpose.msra.mxu0 0
        %1085 = vmatprep.subr.bf16.mxu0 0
        %1086 = vmatpush1.bf16.xpose.msra.mxu0 0
        %1087 = vmatprep.subr.bf16.mxu0 0
        %1088 = vmatpush1.bf16.xpose.msra.mxu0 0
        %1089 = vmatprep.subr.bf16.mxu0 0
        %1090 = vmatpush1.bf16.xpose.msra.mxu0 0
        %1091 = vmatprep.subr.bf16.mxu0 0
        %1092 = vmatpush1.bf16.xpose.msra.mxu0 0
        %1093 = vmatprep.subr.bf16.mxu0 0
        %1094 = vmatpush1.bf16.xpose.msra.mxu0 0
        %1095 = vmatprep.subr.bf16.mxu0 0
        %1096 = vmatpush1.bf16.xpose.msra.mxu0 0
        %1097 = vmatprep.subr.bf16.mxu0 0
        %1098 = vmatpush1.bf16.xpose.msra.mxu0 0
        %1099 = vmatprep.subr.bf16.mxu0 0
        %1100 = vmatpush1.bf16.xpose.msra.mxu0 0
        %1101 = vmatprep.subr.bf16.mxu0 0
        %1102 = vmatpush1.bf16.xpose.msra.mxu0 0
        %1103 = vmatprep.subr.bf16.mxu0 0
        %1104 = vmatpush1.bf16.xpose.msra.mxu0 0
        %1105 = vmatprep.subr.bf16.mxu0 0
        %1106 = vmatpush1.bf16.xpose.msra.mxu0 0
        %1107 = vmatprep.mubr.bf16.mxu0 0
        %1108 = vmatmul.mubr.bf16.gmra.mrb[0].mxu0 %v1067
        %v1109 = vpop.f32.mrb[0].mxu0
        %v1110 = vadd.f32 0.0, %v1109
        %v1111 = vpop.f32.mrb[0].mxu0
        %v1112 = vpop.f32.mrb[0].mxu0
        %v1113 = vpop.f32.mrb[0].mxu0
        %1114 = vdwg.mxu0
        %v1115 = vld [vmem:[%s803] sm:$0x1]
        %vm1116 = vcmp.eq.s32.totalorder %v1115, 0
        %v1117 = vsel %vm1116, 1, 0
        %v1118 = vlaneseq
        %v1119 = vshrl.u32 %v1118, 7
        %v1120 = vsub.s32 0, %v1119
        %v1121 = vrot.slane %v1117, %v1120
        %vm1122 = vcmp.eq.s32.totalorder %v1121, 1
        %v1123 = vsel %vm1122, -1e+20, %v1110
        %v1124 = vsel %vm871, %v1123, -inf
        %1125 = vmax.xlane.f32.xlu0 %v1124
        %v1126 = vpop.xlane.xlu0 %1125
        %v1127 = vsub.f32 %v1123, %v1126
        %v1128 = vmul.f32 %v1127, 1.442695
        %v1129 = vpow.pop %v1128
        %v1130 = vld [vmem:[%s3] sm:$0xff]
        %v1131 = vld [vmem:[%s3 + $0x8] sm:$0xff]
        %v1132 = vld [vmem:[%s3 + $0x10] sm:$0xff]
        %v1133 = vld [vmem:[%s3 + $0x18] sm:$0xff]
        %v1135 = vsel %vm871, %v1129, 0
        %1137 = vmatprep.subr.mxu0 0.0
        %1138 = vmatpush1.msra.mxu0 %v1130
        %1139 = vmatprep.subr.mxu0 0.0
        %1140 = vmatpush1.msra.mxu0 %v1131
        %1141 = vmatprep.subr.mxu0 0.0
        %1142 = vmatpush1.msra.mxu0 %v1132
        %1143 = vmatprep.subr.mxu0 0.0
        %1144 = vmatpush1.msra.mxu0 %v1133
        %1145 = vmatprep.subr.mxu0 0.0
        %1146 = vmatpush1.msra.mxu0 0.0
        %1147 = vmatprep.subr.mxu0 0.0
        %1148 = vmatpush1.msra.mxu0 0.0
        %1149 = vmatprep.subr.mxu0 0.0
        %1150 = vmatpush1.msra.mxu0 0.0
        %1151 = vmatprep.subr.mxu0 0.0
        %1152 = vmatpush1.msra.mxu0 0.0
        %1153 = vmatprep.subr.mxu0 0.0
        %1154 = vmatpush1.msra.mxu0 0.0
        %1155 = vmatprep.subr.mxu0 0.0
        %1156 = vmatpush1.msra.mxu0 0.0
        %1157 = vmatprep.subr.mxu0 0.0
        %1158 = vmatpush1.msra.mxu0 0.0
        %1159 = vmatprep.subr.mxu0 0.0
        %1160 = vmatpush1.msra.mxu0 0.0
        %1161 = vmatprep.subr.mxu0 0.0
        %1162 = vmatpush1.msra.mxu0 0.0
        %1163 = vmatprep.subr.mxu0 0.0
        %1164 = vmatpush1.msra.mxu0 0.0
        %1165 = vmatprep.subr.mxu0 0.0
        %1166 = vmatpush1.msra.mxu0 0.0
        %1167 = vmatprep.subr.mxu0 0.0
        %1168 = vmatpush1.msra.mxu0 0.0
        %1169 = vmatprep.subr.mxu0 0.0
        %1170 = vmatpush1.msra.mxu0 0.0
        %1171 = vmatprep.subr.mxu0 0.0
        %1172 = vmatpush1.msra.mxu0 0.0
        %1173 = vmatprep.subr.mxu0 0.0
        %1174 = vmatpush1.msra.mxu0 0.0
        %1175 = vmatprep.subr.mxu0 0.0
        %1176 = vmatpush1.msra.mxu0 0.0
        %1177 = vmatprep.subr.mxu0 0.0
        %1178 = vmatpush1.msra.mxu0 0.0
        %1179 = vmatprep.subr.mxu0 0.0
        %1180 = vmatpush1.msra.mxu0 0.0
        %1181 = vmatprep.subr.mxu0 0.0
        %1182 = vmatpush1.msra.mxu0 0.0
        %1183 = vmatprep.subr.mxu0 0.0
        %1184 = vmatpush1.msra.mxu0 0.0
        %1185 = vmatprep.subr.mxu0 0.0
        %1186 = vmatpush1.msra.mxu0 0.0
        %1187 = vmatprep.subr.mxu0 0.0
        %1188 = vmatpush1.msra.mxu0 0.0
        %1189 = vmatprep.subr.mxu0 0.0
        %1190 = vmatpush1.msra.mxu0 0.0
        %1191 = vmatprep.subr.mxu0 0.0
        %1192 = vmatpush1.msra.mxu0 0.0
        %1193 = vmatprep.subr.mxu0 0.0
        %1194 = vmatpush1.msra.mxu0 0.0
        %1195 = vmatprep.subr.mxu0 0.0
        %1196 = vmatpush1.msra.mxu0 0.0
        %1197 = vmatprep.subr.mxu0 0.0
        %1198 = vmatpush1.msra.mxu0 0.0
        %1199 = vmatprep.subr.mxu0 0.0
        %1200 = vmatpush1.msra.mxu0 0.0
        %1201 = vmatprep.mubr.f32.mxu0 0.0
        %1202 = vmatmul.mubr.f32.gmra.mrb[0].mxu0 %v1135
        %v1203 = vpop.f32.mrb[0].mxu0
        %v1204 = vadd.f32 0.0, %v1203
        %v1205 = vpop.f32.mrb[0].mxu0
        %1206 = vdwg.mxu0
        %v1207 = vrcp.pop %v1204
        %v1208 = vmul.f32 %v1129, %v1207
        %v1209 = vpack.c.bf16 %v1208, %v1208
        %v1211 = vsel %vm871, %v1209, 0
        %1213 = vmatprep.subr.bf16.mxu0 0
        %1214 = vmatpush1.bf16.msra.mxu0 %v1064
        %1215 = vmatprep.subr.bf16.mxu0 0
        %1216 = vmatpush1.bf16.msra.mxu0 %v1065
        %1217 = vmatprep.subr.bf16.mxu0 0
        %1218 = vmatpush1.bf16.msra.mxu0 0
        %1219 = vmatprep.subr.bf16.mxu0 0
        %1220 = vmatpush1.bf16.msra.mxu0 0
        %1221 = vmatprep.subr.bf16.mxu0 0
        %1222 = vmatpush1.bf16.msra.mxu0 0
        %1223 = vmatprep.subr.bf16.mxu0 0
        %1224 = vmatpush1.bf16.msra.mxu0 0
        %1225 = vmatprep.subr.bf16.mxu0 0
        %1226 = vmatpush1.bf16.msra.mxu0 0
        %1227 = vmatprep.subr.bf16.mxu0 0
        %1228 = vmatpush1.bf16.msra.mxu0 0
        %1229 = vmatprep.subr.bf16.mxu0 0
        %1230 = vmatpush1.bf16.msra.mxu0 0
        %1231 = vmatprep.subr.bf16.mxu0 0
        %1232 = vmatpush1.bf16.msra.mxu0 0
        %1233 = vmatprep.subr.bf16.mxu0 0
        %1234 = vmatpush1.bf16.msra.mxu0 0
        %1235 = vmatprep.subr.bf16.mxu0 0
        %1236 = vmatpush1.bf16.msra.mxu0 0
        %1237 = vmatprep.subr.bf16.mxu0 0
        %1238 = vmatpush1.bf16.msra.mxu0 0
        %1239 = vmatprep.subr.bf16.mxu0 0
        %1240 = vmatpush1.bf16.msra.mxu0 0
        %1241 = vmatprep.subr.bf16.mxu0 0
        %1242 = vmatpush1.bf16.msra.mxu0 0
        %1243 = vmatprep.subr.bf16.mxu0 0
        %1244 = vmatpush1.bf16.msra.mxu0 0
        %1245 = vmatprep.mubr.bf16.mxu0 0
        %1246 = vmatmul.mubr.bf16.gmra.mrb[0].mxu0 %v1211
        %v1247 = vpop.f32.mrb[0].mxu0
        %v1248 = vadd.f32 0.0, %v1247
        %v1249 = vpop.f32.mrb[0].mxu0
        %v1250 = vpop.f32.mrb[0].mxu0
        %v1251 = vpop.f32.mrb[0].mxu0
        %1252 = vdwg.mxu0
        %v1253 = vpack.c.bf16 %v1248, %v1248
        %v1254 = vld [vmem:[%s687] sm:$0xf]
        %v1255 = vld [vmem:[%s687 + $0x4] sm:$0xf]
        %v1256 = vld [vmem:[%s687 + $0x8] sm:$0xf]
        %v1257 = vld [vmem:[%s687 + $0xc] sm:$0xf]
        %v1258 = vld [vmem:[%s821] sm:$0x1]
        %v1260 = vlaneseq
        %v1261 = vshrl.u32 %v1260, 7
        %v1262 = vsub.s32 0, %v1261
        %v1263 = vrot.slane %v1258, %v1262
        %v1269 = vunpack.c.l.b16 %v1254
        %v1270 = vunpack.c.l.b16 %v1255
        %v1271 = vunpack.c.l.b16 %v1256
        %v1272 = vunpack.c.l.b16 %v1257
        %v1273 = vpack.c.b16 %v1270, %v1269
        %v1274 = vpack.c.b16 %v1272, %v1271
        %v1278 = vsel %vm871, %v1253, 0
        %1280 = vmatprep.subr.bf16.mxu0 0
        %1281 = vmatpush1.bf16.msra.mxu0 %v1273
        %1282 = vmatprep.subr.bf16.mxu0 0
        %1283 = vmatpush1.bf16.msra.mxu0 %v1274
        %1284 = vmatprep.subr.bf16.mxu0 0
        %1285 = vmatpush1.bf16.msra.mxu0 0
        %1286 = vmatprep.subr.bf16.mxu0 0
        %1287 = vmatpush1.bf16.msra.mxu0 0
        %1288 = vmatprep.subr.bf16.mxu0 0
        %1289 = vmatpush1.bf16.msra.mxu0 0
        %1290 = vmatprep.subr.bf16.mxu0 0
        %1291 = vmatpush1.bf16.msra.mxu0 0
        %1292 = vmatprep.subr.bf16.mxu0 0
        %1293 = vmatpush1.bf16.msra.mxu0 0
        %1294 = vmatprep.subr.bf16.mxu0 0
        %1295 = vmatpush1.bf16.msra.mxu0 0
        %1296 = vmatprep.subr.bf16.mxu0 0
        %1297 = vmatpush1.bf16.msra.mxu0 0
        %1298 = vmatprep.subr.bf16.mxu0 0
        %1299 = vmatpush1.bf16.msra.mxu0 0
        %1300 = vmatprep.subr.bf16.mxu0 0
        %1301 = vmatpush1.bf16.msra.mxu0 0
        %1302 = vmatprep.subr.bf16.mxu0 0
        %1303 = vmatpush1.bf16.msra.mxu0 0
        %1304 = vmatprep.subr.bf16.mxu0 0
        %1305 = vmatpush1.bf16.msra.mxu0 0
        %1306 = vmatprep.subr.bf16.mxu0 0
        %1307 = vmatpush1.bf16.msra.mxu0 0
        %1308 = vmatprep.subr.bf16.mxu0 0
        %1309 = vmatpush1.bf16.msra.mxu0 0
        %1310 = vmatprep.subr.bf16.mxu0 0
        %1311 = vmatpush1.bf16.msra.mxu0 0
        %1312 = vmatprep.mubr.bf16.mxu0 0
        %1313 = vmatmul.mubr.bf16.gmra.mrb[0].mxu0 %v1278
        %v1314 = vpop.f32.mrb[0].mxu0
        %v1315 = vadd.f32 %v1263, %v1314
        %v1316 = vpop.f32.mrb[0].mxu0
        %v1317 = vpop.f32.mrb[0].mxu0
        %v1318 = vpop.f32.mrb[0].mxu0
        %1319 = vdwg.mxu0
        %v1320 = vadd.f32 %v1315, %v853
        %v1321 = vld [vmem:[%s824] sm:$0x1]
        %v1322 = vld [vmem:[%s827] sm:$0x1]
        %v1323 = vsel %vm871, %v1320, 0.0
        %1324 = vadd.xlane.f32.xlu0 %v1323
        %v1325 = vpop.xlane.xlu0 %1324
        %v1326 = vrcp.pop 32.0
        %v1327 = vmul.f32 %v1325, %v1326
        %v1328 = vsub.f32 %v1320, %v1327
        %v1329 = vmul.f32 %v1328, %v1328
        %v1330 = vsel %vm871, %v1329, 0.0
        %1331 = vadd.xlane.f32.xlu0 %v1330
        %v1332 = vpop.xlane.xlu0 %1331
        %v1333 = vmul.f32 %v1332, %v1326
        %v1334 = vadd.f32 %v1333, 1e-05
        %v1335 = vrsqrt.pop %v1334
        %v1336 = vmul.f32 %v1328, %v1335
        %v1338 = vlaneseq
        %v1339 = vshrl.u32 %v1338, 7
        %v1340 = vsub.s32 0, %v1339
        %v1341 = vrot.slane %v1321, %v1340
        %v1343 = vmul.f32 %v1336, %v1341
        %v1345 = vlaneseq
        %v1346 = vshrl.u32 %v1345, 7
        %v1347 = vsub.s32 0, %v1346
        %v1348 = vrot.slane %v1322, %v1347
        %v1350 = vadd.f32 %v1343, %v1348
        %v1351 = vpack.c.bf16 %v1350, %v1350
        %v1352 = vld [vmem:[%s696] sm:$0xf]
        %v1353 = vld [vmem:[%s696 + $0x4] sm:$0xf]
        %v1354 = vld [vmem:[%s696 + $0x8] sm:$0xf]
        %v1355 = vld [vmem:[%s696 + $0xc] sm:$0xf]
        %v1356 = vld [vmem:[%s830] sm:$0x1]
        %v1358 = vlaneseq
        %v1359 = vshrl.u32 %v1358, 7
        %v1360 = vsub.s32 0, %v1359
        %v1361 = vrot.slane %v1356, %v1360
        %v1367 = vunpack.c.l.b16 %v1352
        %v1368 = vunpack.c.l.b16 %v1353
        %v1369 = vunpack.c.l.b16 %v1354
        %v1370 = vunpack.c.l.b16 %v1355
        %v1371 = vpack.c.b16 %v1368, %v1367
        %v1372 = vpack.c.b16 %v1370, %v1369
        %v1376 = vsel %vm871, %v1351, 0
        %1378 = vmatprep.subr.bf16.mxu0 0
        %1379 = vmatpush1.bf16.msra.mxu0 %v1371
        %1380 = vmatprep.subr.bf16.mxu0 0
        %1381 = vmatpush1.bf16.msra.mxu0 %v1372
        %1382 = vmatprep.subr.bf16.mxu0 0
        %1383 = vmatpush1.bf16.msra.mxu0 0
        %1384 = vmatprep.subr.bf16.mxu0 0
        %1385 = vmatpush1.bf16.msra.mxu0 0
        %1386 = vmatprep.subr.bf16.mxu0 0
        %1387 = vmatpush1.bf16.msra.mxu0 0
        %1388 = vmatprep.subr.bf16.mxu0 0
        %1389 = vmatpush1.bf16.msra.mxu0 0
        %1390 = vmatprep.subr.bf16.mxu0 0
        %1391 = vmatpush1.bf16.msra.mxu0 0
        %1392 = vmatprep.subr.bf16.mxu0 0
        %1393 = vmatpush1.bf16.msra.mxu0 0
        %1394 = vmatprep.subr.bf16.mxu0 0
        %1395 = vmatpush1.bf16.msra.mxu0 0
        %1396 = vmatprep.subr.bf16.mxu0 0
        %1397 = vmatpush1.bf16.msra.mxu0 0
        %1398 = vmatprep.subr.bf16.mxu0 0
        %1399 = vmatpush1.bf16.msra.mxu0 0
        %1400 = vmatprep.subr.bf16.mxu0 0
        %1401 = vmatpush1.bf16.msra.mxu0 0
        %1402 = vmatprep.subr.bf16.mxu0 0
        %1403 = vmatpush1.bf16.msra.mxu0 0
        %1404 = vmatprep.subr.bf16.mxu0 0
        %1405 = vmatpush1.bf16.msra.mxu0 0
        %1406 = vmatprep.subr.bf16.mxu0 0
        %1407 = vmatpush1.bf16.msra.mxu0 0
        %1408 = vmatprep.subr.bf16.mxu0 0
        %1409 = vmatpush1.bf16.msra.mxu0 0
        %1410 = vmatprep.mubr.bf16.mxu0 0
        %1411 = vmatmul.mubr.bf16.gmra.mrb[0].mxu0 %v1376
        %v1412 = vpop.f32.mrb[0].mxu0
        %v1413 = vadd.f32 %v1361, %v1412
        %v1414 = vpop.f32.mrb[0].mxu0
        %v1415 = vpop.f32.mrb[0].mxu0
        %v1416 = vpop.f32.mrb[0].mxu0
        %1417 = vdwg.mxu0
        %v1418 = vmax.f32 %v1413, 0.0
        %v1419 = vpack.c.bf16 %v1418, %v1418
        %v1420 = vld [vmem:[%s835] sm:$0xf]
        %v1421 = vld [vmem:[%s835 + $0x4] sm:$0xf]
        %v1422 = vld [vmem:[%s835 + $0x8] sm:$0xf]
        %v1423 = vld [vmem:[%s835 + $0xc] sm:$0xf]
        %v1424 = vld [vmem:[%s835 + $0x10] sm:$0xf]
        %v1425 = vld [vmem:[%s835 + $0x14] sm:$0xf]
        %v1426 = vld [vmem:[%s835 + $0x18] sm:$0xf]
        %v1427 = vld [vmem:[%s835 + $0x1c] sm:$0xf]
        %v1428 = vld [vmem:[%s835 + $0x20] sm:$0xf]
        %v1429 = vld [vmem:[%s835 + $0x24] sm:$0xf]
        %v1430 = vld [vmem:[%s835 + $0x28] sm:$0xf]
        %v1431 = vld [vmem:[%s835 + $0x2c] sm:$0xf]
        %v1432 = vld [vmem:[%s835 + $0x30] sm:$0xf]
        %v1433 = vld [vmem:[%s835 + $0x34] sm:$0xf]
        %v1434 = vld [vmem:[%s835 + $0x38] sm:$0xf]
        %v1435 = vld [vmem:[%s835 + $0x3c] sm:$0xf]
        %v1436 = vld [vmem:[%s838] sm:$0x1]
        %v1438 = vlaneseq
        %v1439 = vshrl.u32 %v1438, 7
        %v1440 = vsub.s32 0, %v1439
        %v1441 = vrot.slane %v1436, %v1440
        %v1459 = vunpack.c.l.b16 %v1420
        %v1460 = vunpack.c.l.b16 %v1421
        %v1461 = vunpack.c.l.b16 %v1422
        %v1462 = vunpack.c.l.b16 %v1423
        %v1463 = vunpack.c.l.b16 %v1424
        %v1464 = vunpack.c.l.b16 %v1425
        %v1465 = vunpack.c.l.b16 %v1426
        %v1466 = vunpack.c.l.b16 %v1427
        %v1467 = vunpack.c.l.b16 %v1428
        %v1468 = vunpack.c.l.b16 %v1429
        %v1469 = vunpack.c.l.b16 %v1430
        %v1470 = vunpack.c.l.b16 %v1431
        %v1471 = vunpack.c.l.b16 %v1432
        %v1472 = vunpack.c.l.b16 %v1433
        %v1473 = vunpack.c.l.b16 %v1434
        %v1474 = vunpack.c.l.b16 %v1435
        %v1475 = vpack.c.b16 %v1460, %v1459
        %v1476 = vpack.c.b16 %v1462, %v1461
        %v1477 = vpack.c.b16 %v1464, %v1463
        %v1478 = vpack.c.b16 %v1466, %v1465
        %v1479 = vpack.c.b16 %v1468, %v1467
        %v1480 = vpack.c.b16 %v1470, %v1469
        %v1481 = vpack.c.b16 %v1472, %v1471
        %v1482 = vpack.c.b16 %v1474, %v1473
        %1491 = vmatprep.subr.bf16.mxu0 0
        %1492 = vmatpush1.bf16.msra.mxu0 %v1475
        %1493 = vmatprep.subr.bf16.mxu0 0
        %1494 = vmatpush1.bf16.msra.mxu0 %v1476
        %1495 = vmatprep.subr.bf16.mxu0 0
        %1496 = vmatpush1.bf16.msra.mxu0 %v1477
        %1497 = vmatprep.subr.bf16.mxu0 0
        %1498 = vmatpush1.bf16.msra.mxu0 %v1478
        %1499 = vmatprep.subr.bf16.mxu0 0
        %1500 = vmatpush1.bf16.msra.mxu0 %v1479
        %1501 = vmatprep.subr.bf16.mxu0 0
        %1502 = vmatpush1.bf16.msra.mxu0 %v1480
        %1503 = vmatprep.subr.bf16.mxu0 0
        %1504 = vmatpush1.bf16.msra.mxu0 %v1481
        %1505 = vmatprep.subr.bf16.mxu0 0
        %1506 = vmatpush1.bf16.msra.mxu0 %v1482
        %1507 = vmatprep.subr.bf16.mxu0 0
        %1508 = vmatpush1.bf16.msra.mxu0 0
        %1509 = vmatprep.subr.bf16.mxu0 0
        %1510 = vmatpush1.bf16.msra.mxu0 0
        %1511 = vmatprep.subr.bf16.mxu0 0
        %1512 = vmatpush1.bf16.msra.mxu0 0
        %1513 = vmatprep.subr.bf16.mxu0 0
        %1514 = vmatpush1.bf16.msra.mxu0 0
        %1515 = vmatprep.subr.bf16.mxu0 0
        %1516 = vmatpush1.bf16.msra.mxu0 0
        %1517 = vmatprep.subr.bf16.mxu0 0
        %1518 = vmatpush1.bf16.msra.mxu0 0
        %1519 = vmatprep.subr.bf16.mxu0 0
        %1520 = vmatpush1.bf16.msra.mxu0 0
        %1521 = vmatprep.subr.bf16.mxu0 0
        %1522 = vmatpush1.bf16.msra.mxu0 0
        %1523 = vmatprep.mubr.bf16.mxu0 0
        %1524 = vmatmul.mubr.bf16.gmra.mrb[0].mxu0 %v1419
        %v1525 = vpop.f32.mrb[0].mxu0
        %v1526 = vadd.f32 %v1441, %v1525
        %v1527 = vpop.f32.mrb[0].mxu0
        %v1528 = vpop.f32.mrb[0].mxu0
        %v1529 = vpop.f32.mrb[0].mxu0
        %1530 = vdwg.mxu0
        %v1531 = vadd.f32 %v1526, %v1350
        %v1532 = vld [vmem:[%s841] sm:$0x1]
        %v1533 = vld [vmem:[%s844] sm:$0x1]
        %v1534 = vsel %vm871, %v1531, 0.0
        %1535 = vadd.xlane.f32.xlu0 %v1534
        %v1536 = vpop.xlane.xlu0 %1535
        %v1537 = vmul.f32 %v1536, %v1326
        %v1538 = vsub.f32 %v1531, %v1537
        %v1539 = vmul.f32 %v1538, %v1538
        %v1540 = vsel %vm871, %v1539, 0.0
        %1541 = vadd.xlane.f32.xlu0 %v1540
        %v1542 = vpop.xlane.xlu0 %1541
        %v1543 = vmul.f32 %v1542, %v1326
        %v1544 = vadd.f32 %v1543, 1e-05
        %v1545 = vrsqrt.pop %v1544
        %v1546 = vmul.f32 %v1538, %v1545
        %v1548 = vlaneseq
        %v1549 = vshrl.u32 %v1548, 7
        %v1550 = vsub.s32 0, %v1549
        %v1551 = vrot.slane %v1532, %v1550
        %v1553 = vmul.f32 %v1546, %v1551
        %v1555 = vlaneseq
        %v1556 = vshrl.u32 %v1555, 7
        %v1557 = vsub.s32 0, %v1556
        %v1558 = vrot.slane %v1533, %v1557
        %v1560 = vadd.f32 %v1553, %v1558
        %1561 = vst.msk [vmem:[#allocation2] sm:$0xff] %vm871, %v1560
        %p1562 = scmp.eq.s32.totalorder %s42, 1
        // Predicated region
        $region105: #{tpu_custom_call.1} parent=87 // pred_check
          %p1563 = pneg %p1562
        $region106: #{tpu_custom_call.1} parent=87 // pred_check_branch
          %1565 = sbr.rel (%p1563) target = $region108
        $region107: #{tpu_custom_call.1} parent=87 // pred_region
          %1566 = vst.msk [vmem:[%s800] sm:$0xff] %vm871, %v1560
        $region108: #{tpu_custom_call.1} parent=87 // pred_fallthru
          _
        %s1567 = sand.u32 %s489, 1
        %s1568 = scalar_lea.sflag [#allocation5], %s1567
        %s1569 = sand.u32 %s489, 1
        %s1570 = smul.addr %s1569, 8
        %s1571 = scalar_lea.vmem [#allocation9], %s1570
        // Predicated region
        $region109: #{tpu_custom_call.1} parent=87 // pred_check
          %p1572 = pneg %p499
        $region110: #{tpu_custom_call.1} parent=87 // pred_check_branch
          %1574 = sbr.rel (%p1572) target = $region112
        $region111: #{tpu_custom_call.1} parent=87 // pred_region
          %s1576 = ssub.s32 128, 128
          %1577 = vsyncadd %s1568, %s1576
          %s1578 = smul.addr %s41, 128
          %s1579 = scalar_lea.hbm %s17, %s1578
          %s1581 = sshll.u32 %s1571, 4
          %s1582 = int_to_ptr.vmem [resolvable:$true] %s1581
          %1584 = dma.vmem_to_hbm [thread:$0]  %s1582, 128, %s1579, %s1568
        $region112: #{tpu_custom_call.1} parent=87 // pred_fallthru
          _
      $region88: #{tpu_custom_call.1} parent=5 // pred_fallthru
        _
      %p1585 = scmp.le.s32.totalorder 2, %s32
      // Predicated region
      $region113: #{tpu_custom_call.1} parent=5 // pred_check
        %p1586 = pneg %p1585
      $region114: #{tpu_custom_call.1} parent=5 // pred_check_branch
        %1588 = sbr.rel (%p1586) target = $region116
      $region115: #{tpu_custom_call.1} parent=5 // pred_region
        %s1589 = ssub.s32 %s32, 2
        // Predicated region
        $region117: #{tpu_custom_call.1} parent=115 // pred_check
          %p1590 = pneg %p505
        $region118: #{tpu_custom_call.1} parent=115 // pred_check_branch
          %1592 = sbr.rel (%p1590) target = $region120
        $region119: #{tpu_custom_call.1} parent=115 // pred_region
          %s1593 = sand.u32 %s490, 1
          %s1594 = scalar_lea.sflag [#allocation5], %s1593
          %s1595 = sand.u32 %s490, 1
          %s1596 = smul.addr %s1595, 8
          %s1597 = scalar_lea.vmem [#allocation9], %s1596
          %1598 = dma.done %s1594, 128
        $region120: #{tpu_custom_call.1} parent=115 // pred_fallthru
          _
      $region116: #{tpu_custom_call.1} parent=5 // pred_fallthru
        _
    $region6: #{tpu_custom_call.1} parent=1 // loop_footer
      %s36 = sadd.s32 1, %s32
    $region7: #{tpu_custom_call.1} parent=1 // loop_footer_branch
      %31 = sbr.rel target = $region3
    $region8: #{tpu_custom_call.1} parent=1 // loop_exit
      _
    %1599 = vsyncpa [#allocation4], 1
    %s1600 = scalar_lea.sflag [#allocation4], 1
    %1601 = vsyncpa %s1600, 1
    %1602 = vsyncpa [#allocation7], 1
    %s1603 = scalar_lea.sflag [#allocation7], 1
    %1604 = vsyncpa %s1603, 1
    %1605 = vsyncpa [#allocation5], 1
    %s1606 = scalar_lea.sflag [#allocation5], 1
    %1607 = vsyncpa %s1606, 1

</llo_original>
